<compile_context>
chip_gen: v7x
topology: tpu7x:2x2x1
jax: 0.10.0
libtpu: 0.0.40
codegen_flags: <defaults>
</compile_context>

<pallas_src>
import jax
import jax.numpy as jnp
from jax.experimental import pallas as pl
from jax.experimental.pallas import tpu as pltpu

K = 7          # conv kernel size
PAD = 3        # reflect padding


def _reflect_pad_2d(a, H, W):
    """PyTorch 'reflect' pad (edge not repeated) by PAD on both dims, built as
    a single traced value (register-level concats, no scratch round-trips)."""
    top = jnp.concatenate([a[PAD - p:PAD - p + 1, :] for p in range(PAD)], axis=0)
    bot = jnp.concatenate([a[H - 2 - p:H - 1 - p, :] for p in range(PAD)], axis=0)
    ar = jnp.concatenate([top, a, bot], axis=0)                       # (Hp, W)
    left = jnp.concatenate([ar[:, PAD - p:PAD - p + 1] for p in range(PAD)], axis=1)
    right = jnp.concatenate([ar[:, W - 2 - p:W - 1 - p] for p in range(PAD)], axis=1)
    return jnp.concatenate([left, ar, right], axis=1)                 # (Hp, Wp)


def _sa_kernel(w_ref, x_ref, out_ref, shift_ref):
    # w_ref:     VMEM (K*K + 1, 2*W) f32. Row t = [w_avg[t]]*W ++ [w_max[t]]*W,
    #            last row = bias/2 in every lane (the two halves sum to bias).
    # x_ref:     VMEM (NB, C, H, W) unpadded input block (NB images per step).
    # out_ref:   VMEM (NB, 1, H, W).
    # shift_ref: VMEM scratch (K, Hp, 2*W) f32, lane-packed dx-shifted maps.
    NB, C, H, W = x_ref.shape
    W2 = 2 * W
    KK = K * K
    NACC = 4
    RS = H if H <= 32 else 32

    for nb in range(NB):
        # ---- 1) channel reduction: unrolled, 2 partial accumulators --------
        p0 = x_ref[nb, 0].astype(jnp.float32)
        s0, m0 = p0, p0
        if C > 1:
            p1 = x_ref[nb, 1].astype(jnp.float32)
            s1, m1 = p1, p1
        else:
            s1 = jnp.zeros_like(p0)
            m1 = p0
        for c in range(2, C):
            pc = x_ref[nb, c].astype(jnp.float32)
            if c % 2 == 0:
                s0 = s0 + pc
                m0 = jnp.maximum(m0, pc)
            else:
                s1 = s1 + pc
                m1 = jnp.maximum(m1, pc)
        x_avg = (s0 + s1) * (1.0 / C)
        x_max = jnp.maximum(m0, m1)

        # ---- 2) reflect pad, built in registers (one value per channel) ----
        avg_pad = _reflect_pad_2d(x_avg, H, W)       # (Hp, Wp)
        max_pad = _reflect_pad_2d(x_max, H, W)       # (Hp, Wp)

        # ---- 3) hoist the K lane-direction (dx) shifts, lane-packed --------
        # avg in lanes [0, W), max in lanes [W, 2W); one store per dx.
        for dx in range(K):
            shift_ref[dx] = jnp.concatenate(
                [avg_pad[:, dx:dx + W], max_pad[:, dx:dx + W]], axis=1)

        # ---- 4) strip-mined 7x7 tap accumulation ----------------------------
        # Independent partial accumulators break the serial vadd chain; each
        # tap is one vmul + one vadd on a lane-packed (rs, 2W) value.
        for r0 in range(0, H, RS):
            rs = min(RS, H - r0)
            accs = [jnp.broadcast_to(w_ref[KK, :], (rs, W2))] + [
                jnp.zeros((rs, W2), jnp.float32) for _ in range(NACC - 1)]
            t = 0
            for dy in range(K):
                for dx in range(K):
                    accs[t % NACC] = accs[t % NACC] + (
                        w_ref[t, :] * shift_ref[dx, r0 + dy:r0 + dy + rs, :])
                    t += 1
            acc = (accs[0] + accs[1]) + (accs[2] + accs[3])
            res = acc[:, :W] + acc[:, W:W2]          # fold avg/max halves (+ bias)
            out_ref[nb, 0, r0:r0 + rs, :] = res.astype(out_ref.dtype)


def _pick_images_per_step(n):
    """Largest NB <= 8 that divides N while keeping grid length >= 2 (so both
    v7x TensorCores get work); falls back to 1."""
    best = 1
    for nb in range(2, min(n, 8) + 1):
        if n % nb == 0 and n // nb >= 2:
            best = nb
    return best


def spatial_attention(x, weight, bias):
    """x: (N, C, H, W); weight: (1, 2, 7, 7); bias: (1,) -> (N, 1, H, W)."""
    N, C, H, W = x.shape
    assert H > PAD and W > PAD, "reflect padding needs spatial dims > 3"
    Hp = H + 2 * PAD
    KK = K * K
    W2 = 2 * W

    NB = _pick_images_per_step(N)
    grid = N // NB

    # Per-lane weight tile: row t = [w_avg[t]]*W ++ [w_max[t]]*W; last row is
    # bias/2 broadcast across all lanes (the two halves sum to the full bias).
    w_avg = weight[0, 0].reshape(-1).astype(jnp.float32)   # (49,)
    w_max = weight[0, 1].reshape(-1).astype(jnp.float32)   # (49,)
    w_rows = jnp.concatenate(
        [jnp.repeat(w_avg[:, None], W, axis=1),
         jnp.repeat(w_max[:, None], W, axis=1)], axis=1)   # (49, 2W)
    bias_row = jnp.broadcast_to(bias.astype(jnp.float32) * 0.5, (1, W2))
    w_tile = jnp.concatenate([w_rows, bias_row], axis=0)   # (50, 2W) f32

    itemsize = jnp.dtype(x.dtype).itemsize
    scratch_bytes = K * Hp * W2 * 4
    vmem_need = (2 * NB * C * H * W * itemsize     # double-buffered input block
                 + 2 * NB * H * W * itemsize       # double-buffered output block
                 + 2 * (KK + 1) * W2 * 4           # weight tile
                 + scratch_bytes)
    vmem_limit = int(min(48 * 1024 * 1024, max(2 * vmem_need, 4 * 1024 * 1024)))

    cost = pl.CostEstimate(
        flops=int(N * (2 * C * H * W + 2 * KK * H * W2 + H * W)),
        transcendentals=0,
        bytes_accessed=int(N * C * H * W * itemsize
                           + N * H * W * itemsize
                           + (KK + 1) * W2 * 4),
    )

    return pl.pallas_call(
        _sa_kernel,
        out_shape=jax.ShapeDtypeStruct((N, 1, H, W), x.dtype),
        grid_spec=pltpu.PrefetchScalarGridSpec(
            num_scalar_prefetch=0,
            grid=(grid,),
            in_specs=[
                pl.BlockSpec((KK + 1, W2), lambda n: (0, 0)),          # weights
                pl.BlockSpec((NB, C, H, W), lambda n: (n, 0, 0, 0)),   # x block
            ],
            out_specs=pl.BlockSpec((NB, 1, H, W), lambda n: (n, 0, 0, 0)),
            scratch_shapes=[pltpu.VMEM((K, Hp, W2), jnp.float32)],
        ),
        compiler_params=pltpu.CompilerParams(
            dimension_semantics=("parallel",),
            vmem_limit_bytes=vmem_limit,
        ),
        cost_estimate=cost,
    )(w_tile, x)


def _reference(x, weight, bias):
    """Pure-JAX reference matching the PyTorch forward."""
    x_avg = jnp.mean(x, axis=1, keepdims=True)
    x_max = jnp.max(x, axis=1, keepdims=True)
    x2 = jnp.concatenate([x_avg, x_max], axis=1)                  # (N, 2, H, W)
    x2p = jnp.pad(x2, ((0, 0), (0, 0), (PAD, PAD), (PAD, PAD)), mode="reflect")
    out = jax.lax.conv_general_dilated(
        x2p, weight, window_strides=(1, 1), padding="VALID",
        dimension_numbers=("NCHW", "OIHW", "NCHW"),
    )
    return out + bias.reshape(1, 1, 1, 1)


if __name__ == "__main__":
    key = jax.random.PRNGKey(0)
    kx, kw, kb = jax.random.split(key, 3)

    N, C, H, W = 2, 4, 16, 16
    x = jax.random.normal(kx, (N, C, H, W), dtype=jnp.float32)

    # Deterministic synthetic Conv2d(2, 1, 7) parameters.
    weight = 0.05 * jax.random.normal(kw, (1, 2, K, K), dtype=jnp.float32)
    bias = 0.1 * jax.random.normal(kb, (1,), dtype=jnp.float32)

    out = spatial_attention(x, weight, bias)
    out = jax.block_until_ready(out)

    ref = _reference(x, weight, bias)
    assert out.shape == (N, 1, H, W)
    assert jnp.allclose(out, ref, atol=1e-4, rtol=1e-4)

    print("KERNEL_OK")
</pallas_src>

<mosaic_0001>
module attributes {stable_mosaic.version = 11 : i64} {
  func.func @_sa_kernel(%arg0: i32, %arg1: memref<50x32xf32, #tpu.memory_space<vmem>>, %arg2: memref<1x4x16x16xf32, #tpu.memory_space<vmem>>, %arg3: memref<1x1x16x16xf32, #tpu.memory_space<vmem>>, %arg4: memref<7x22x32xf32, #tpu.memory_space<vmem>>) attributes {dimension_semantics = [#tpu.dimension_semantics<parallel>], iteration_bounds = array<i64: 2>, scalar_prefetch = 0 : i64, scratch_operands = 1 : i64, tpu.core_type = #tpu.core_type<tc>, window_params = [{pipeline_mode = #tpu.pipeline_mode<synchronous>, transform_indices = @transform_0, window_bounds = array<i64: 50, 32>}, {transform_indices = @transform_1, window_bounds = array<i64: 1, 4, 16, 16>}, {transform_indices = @transform_2, window_bounds = array<i64: 1, 1, 16, 16>}]} {
    %c0 = arith.constant 0 : index
    %c0_0 = arith.constant 0 : index
    %c0_1 = arith.constant 0 : index
    %c0_2 = arith.constant 0 : index
    %0 = vector.load %arg2[%c0, %c0_0, %c0_1, %c0_2] : memref<1x4x16x16xf32, #tpu.memory_space<vmem>>, vector<1x1x16x16xf32>
    %1 = vector.shape_cast %0 : vector<1x1x16x16xf32> to vector<16x16xf32>
    %c0_3 = arith.constant 0 : index
    %c1 = arith.constant 1 : index
    %c0_4 = arith.constant 0 : index
    %c0_5 = arith.constant 0 : index
    %2 = vector.load %arg2[%c0_3, %c1, %c0_4, %c0_5] : memref<1x4x16x16xf32, #tpu.memory_space<vmem>>, vector<1x1x16x16xf32>
    %3 = vector.shape_cast %2 : vector<1x1x16x16xf32> to vector<16x16xf32>
    %c0_6 = arith.constant 0 : index
    %c2 = arith.constant 2 : index
    %c0_7 = arith.constant 0 : index
    %c0_8 = arith.constant 0 : index
    %4 = vector.load %arg2[%c0_6, %c2, %c0_7, %c0_8] : memref<1x4x16x16xf32, #tpu.memory_space<vmem>>, vector<1x1x16x16xf32>
    %5 = vector.shape_cast %4 : vector<1x1x16x16xf32> to vector<16x16xf32>
    %6 = arith.addf %1, %5 : vector<16x16xf32>
    %7 = arith.maximumf %1, %5 : vector<16x16xf32>
    %c0_9 = arith.constant 0 : index
    %c3 = arith.constant 3 : index
    %c0_10 = arith.constant 0 : index
    %c0_11 = arith.constant 0 : index
    %8 = vector.load %arg2[%c0_9, %c3, %c0_10, %c0_11] : memref<1x4x16x16xf32, #tpu.memory_space<vmem>>, vector<1x1x16x16xf32>
    %9 = vector.shape_cast %8 : vector<1x1x16x16xf32> to vector<16x16xf32>
    %10 = arith.addf %3, %9 : vector<16x16xf32>
    %11 = arith.maximumf %3, %9 : vector<16x16xf32>
    %12 = arith.addf %6, %10 : vector<16x16xf32>
    %cst = arith.constant 2.500000e-01 : f32
    %13 = vector.broadcast %cst : f32 to vector<16x16xf32>
    %14 = arith.mulf %12, %13 : vector<16x16xf32>
    %15 = arith.maximumf %7, %11 : vector<16x16xf32>
    %16 = vector.extract_strided_slice %14 {offsets = [3, 0], sizes = [1, 16], strides = [1, 1]} : vector<16x16xf32> to vector<1x16xf32>
    %17 = vector.extract_strided_slice %14 {offsets = [2, 0], sizes = [1, 16], strides = [1, 1]} : vector<16x16xf32> to vector<1x16xf32>
    %18 = vector.extract_strided_slice %14 {offsets = [1, 0], sizes = [1, 16], strides = [1, 1]} : vector<16x16xf32> to vector<1x16xf32>
    %19 = tpu.concatenate %16, %17, %18 in 0 : vector<1x16xf32>, vector<1x16xf32>, vector<1x16xf32> -> vector<3x16xf32>
    %20 = vector.extract_strided_slice %14 {offsets = [14, 0], sizes = [1, 16], strides = [1, 1]} : vector<16x16xf32> to vector<1x16xf32>
    %21 = vector.extract_strided_slice %14 {offsets = [13, 0], sizes = [1, 16], strides = [1, 1]} : vector<16x16xf32> to vector<1x16xf32>
    %22 = vector.extract_strided_slice %14 {offsets = [12, 0], sizes = [1, 16], strides = [1, 1]} : vector<16x16xf32> to vector<1x16xf32>
    %23 = tpu.concatenate %20, %21, %22 in 0 : vector<1x16xf32>, vector<1x16xf32>, vector<1x16xf32> -> vector<3x16xf32>
    %24 = tpu.concatenate %19, %14, %23 in 0 : vector<3x16xf32>, vector<16x16xf32>, vector<3x16xf32> -> vector<22x16xf32>
    %25 = vector.extract_strided_slice %24 {offsets = [0, 3], sizes = [22, 1], strides = [1, 1]} : vector<22x16xf32> to vector<22x1xf32>
    %26 = vector.extract_strided_slice %24 {offsets = [0, 2], sizes = [22, 1], strides = [1, 1]} : vector<22x16xf32> to vector<22x1xf32>
    %27 = vector.extract_strided_slice %24 {offsets = [0, 1], sizes = [22, 1], strides = [1, 1]} : vector<22x16xf32> to vector<22x1xf32>
    %28 = tpu.concatenate %25, %26, %27 in 1 : vector<22x1xf32>, vector<22x1xf32>, vector<22x1xf32> -> vector<22x3xf32>
    %29 = vector.extract_strided_slice %24 {offsets = [0, 14], sizes = [22, 1], strides = [1, 1]} : vector<22x16xf32> to vector<22x1xf32>
    %30 = vector.extract_strided_slice %24 {offsets = [0, 13], sizes = [22, 1], strides = [1, 1]} : vector<22x16xf32> to vector<22x1xf32>
    %31 = vector.extract_strided_slice %24 {offsets = [0, 12], sizes = [22, 1], strides = [1, 1]} : vector<22x16xf32> to vector<22x1xf32>
    %32 = tpu.concatenate %29, %30, %31 in 1 : vector<22x1xf32>, vector<22x1xf32>, vector<22x1xf32> -> vector<22x3xf32>
    %33 = tpu.concatenate %28, %24, %32 in 1 : vector<22x3xf32>, vector<22x16xf32>, vector<22x3xf32> -> vector<22x22xf32>
    %34 = vector.extract_strided_slice %15 {offsets = [3, 0], sizes = [1, 16], strides = [1, 1]} : vector<16x16xf32> to vector<1x16xf32>
    %35 = vector.extract_strided_slice %15 {offsets = [2, 0], sizes = [1, 16], strides = [1, 1]} : vector<16x16xf32> to vector<1x16xf32>
    %36 = vector.extract_strided_slice %15 {offsets = [1, 0], sizes = [1, 16], strides = [1, 1]} : vector<16x16xf32> to vector<1x16xf32>
    %37 = tpu.concatenate %34, %35, %36 in 0 : vector<1x16xf32>, vector<1x16xf32>, vector<1x16xf32> -> vector<3x16xf32>
    %38 = vector.extract_strided_slice %15 {offsets = [14, 0], sizes = [1, 16], strides = [1, 1]} : vector<16x16xf32> to vector<1x16xf32>
    %39 = vector.extract_strided_slice %15 {offsets = [13, 0], sizes = [1, 16], strides = [1, 1]} : vector<16x16xf32> to vector<1x16xf32>
    %40 = vector.extract_strided_slice %15 {offsets = [12, 0], sizes = [1, 16], strides = [1, 1]} : vector<16x16xf32> to vector<1x16xf32>
    %41 = tpu.concatenate %38, %39, %40 in 0 : vector<1x16xf32>, vector<1x16xf32>, vector<1x16xf32> -> vector<3x16xf32>
    %42 = tpu.concatenate %37, %15, %41 in 0 : vector<3x16xf32>, vector<16x16xf32>, vector<3x16xf32> -> vector<22x16xf32>
    %43 = vector.extract_strided_slice %42 {offsets = [0, 3], sizes = [22, 1], strides = [1, 1]} : vector<22x16xf32> to vector<22x1xf32>
    %44 = vector.extract_strided_slice %42 {offsets = [0, 2], sizes = [22, 1], strides = [1, 1]} : vector<22x16xf32> to vector<22x1xf32>
    %45 = vector.extract_strided_slice %42 {offsets = [0, 1], sizes = [22, 1], strides = [1, 1]} : vector<22x16xf32> to vector<22x1xf32>
    %46 = tpu.concatenate %43, %44, %45 in 1 : vector<22x1xf32>, vector<22x1xf32>, vector<22x1xf32> -> vector<22x3xf32>
    %47 = vector.extract_strided_slice %42 {offsets = [0, 14], sizes = [22, 1], strides = [1, 1]} : vector<22x16xf32> to vector<22x1xf32>
    %48 = vector.extract_strided_slice %42 {offsets = [0, 13], sizes = [22, 1], strides = [1, 1]} : vector<22x16xf32> to vector<22x1xf32>
    %49 = vector.extract_strided_slice %42 {offsets = [0, 12], sizes = [22, 1], strides = [1, 1]} : vector<22x16xf32> to vector<22x1xf32>
    %50 = tpu.concatenate %47, %48, %49 in 1 : vector<22x1xf32>, vector<22x1xf32>, vector<22x1xf32> -> vector<22x3xf32>
    %51 = tpu.concatenate %46, %42, %50 in 1 : vector<22x3xf32>, vector<22x16xf32>, vector<22x3xf32> -> vector<22x22xf32>
    %52 = vector.extract_strided_slice %33 {offsets = [0, 0], sizes = [22, 16], strides = [1, 1]} : vector<22x22xf32> to vector<22x16xf32>
    %53 = vector.extract_strided_slice %51 {offsets = [0, 0], sizes = [22, 16], strides = [1, 1]} : vector<22x22xf32> to vector<22x16xf32>
    %54 = tpu.concatenate %52, %53 in 1 : vector<22x16xf32>, vector<22x16xf32> -> vector<22x32xf32>
    %c0_12 = arith.constant 0 : index
    %c0_13 = arith.constant 0 : index
    %c0_14 = arith.constant 0 : index
    %55 = vector.load %arg4[%c0_12, %c0_13, %c0_14] : memref<7x22x32xf32, #tpu.memory_space<vmem>>, vector<1x22x32xf32>
    %56 = vector.shape_cast %55 : vector<1x22x32xf32> to vector<22x32xf32>
    %57 = vector.shape_cast %54 : vector<22x32xf32> to vector<1x22x32xf32>
    tpu.vector_store %arg4[%c0_12, %c0_13, %c0_14], %57 {strides = array<i32>} : memref<7x22x32xf32, #tpu.memory_space<vmem>>, vector<1x22x32xf32>,
    %58 = vector.extract_strided_slice %33 {offsets = [0, 1], sizes = [22, 16], strides = [1, 1]} : vector<22x22xf32> to vector<22x16xf32>
    %59 = vector.extract_strided_slice %51 {offsets = [0, 1], sizes = [22, 16], strides = [1, 1]} : vector<22x22xf32> to vector<22x16xf32>
    %60 = tpu.concatenate %58, %59 in 1 : vector<22x16xf32>, vector<22x16xf32> -> vector<22x32xf32>
    %c1_15 = arith.constant 1 : index
    %c0_16 = arith.constant 0 : index
    %c0_17 = arith.constant 0 : index
    %61 = vector.load %arg4[%c1_15, %c0_16, %c0_17] : memref<7x22x32xf32, #tpu.memory_space<vmem>>, vector<1x22x32xf32>
    %62 = vector.shape_cast %61 : vector<1x22x32xf32> to vector<22x32xf32>
    %63 = vector.shape_cast %60 : vector<22x32xf32> to vector<1x22x32xf32>
    tpu.vector_store %arg4[%c1_15, %c0_16, %c0_17], %63 {strides = array<i32>} : memref<7x22x32xf32, #tpu.memory_space<vmem>>, vector<1x22x32xf32>,
    %64 = vector.extract_strided_slice %33 {offsets = [0, 2], sizes = [22, 16], strides = [1, 1]} : vector<22x22xf32> to vector<22x16xf32>
    %65 = vector.extract_strided_slice %51 {offsets = [0, 2], sizes = [22, 16], strides = [1, 1]} : vector<22x22xf32> to vector<22x16xf32>
    %66 = tpu.concatenate %64, %65 in 1 : vector<22x16xf32>, vector<22x16xf32> -> vector<22x32xf32>
    %c2_18 = arith.constant 2 : index
    %c0_19 = arith.constant 0 : index
    %c0_20 = arith.constant 0 : index
    %67 = vector.load %arg4[%c2_18, %c0_19, %c0_20] : memref<7x22x32xf32, #tpu.memory_space<vmem>>, vector<1x22x32xf32>
    %68 = vector.shape_cast %67 : vector<1x22x32xf32> to vector<22x32xf32>
    %69 = vector.shape_cast %66 : vector<22x32xf32> to vector<1x22x32xf32>
    tpu.vector_store %arg4[%c2_18, %c0_19, %c0_20], %69 {strides = array<i32>} : memref<7x22x32xf32, #tpu.memory_space<vmem>>, vector<1x22x32xf32>,
    %70 = vector.extract_strided_slice %33 {offsets = [0, 3], sizes = [22, 16], strides = [1, 1]} : vector<22x22xf32> to vector<22x16xf32>
    %71 = vector.extract_strided_slice %51 {offsets = [0, 3], sizes = [22, 16], strides = [1, 1]} : vector<22x22xf32> to vector<22x16xf32>
    %72 = tpu.concatenate %70, %71 in 1 : vector<22x16xf32>, vector<22x16xf32> -> vector<22x32xf32>
    %c3_21 = arith.constant 3 : index
    %c0_22 = arith.constant 0 : index
    %c0_23 = arith.constant 0 : index
    %73 = vector.load %arg4[%c3_21, %c0_22, %c0_23] : memref<7x22x32xf32, #tpu.memory_space<vmem>>, vector<1x22x32xf32>
    %74 = vector.shape_cast %73 : vector<1x22x32xf32> to vector<22x32xf32>
    %75 = vector.shape_cast %72 : vector<22x32xf32> to vector<1x22x32xf32>
    tpu.vector_store %arg4[%c3_21, %c0_22, %c0_23], %75 {strides = array<i32>} : memref<7x22x32xf32, #tpu.memory_space<vmem>>, vector<1x22x32xf32>,
    %76 = vector.extract_strided_slice %33 {offsets = [0, 4], sizes = [22, 16], strides = [1, 1]} : vector<22x22xf32> to vector<22x16xf32>
    %77 = vector.extract_strided_slice %51 {offsets = [0, 4], sizes = [22, 16], strides = [1, 1]} : vector<22x22xf32> to vector<22x16xf32>
    %78 = tpu.concatenate %76, %77 in 1 : vector<22x16xf32>, vector<22x16xf32> -> vector<22x32xf32>
    %c4 = arith.constant 4 : index
    %c0_24 = arith.constant 0 : index
    %c0_25 = arith.constant 0 : index
    %79 = vector.load %arg4[%c4, %c0_24, %c0_25] : memref<7x22x32xf32, #tpu.memory_space<vmem>>, vector<1x22x32xf32>
    %80 = vector.shape_cast %79 : vector<1x22x32xf32> to vector<22x32xf32>
    %81 = vector.shape_cast %78 : vector<22x32xf32> to vector<1x22x32xf32>
    tpu.vector_store %arg4[%c4, %c0_24, %c0_25], %81 {strides = array<i32>} : memref<7x22x32xf32, #tpu.memory_space<vmem>>, vector<1x22x32xf32>,
    %82 = vector.extract_strided_slice %33 {offsets = [0, 5], sizes = [22, 16], strides = [1, 1]} : vector<22x22xf32> to vector<22x16xf32>
    %83 = vector.extract_strided_slice %51 {offsets = [0, 5], sizes = [22, 16], strides = [1, 1]} : vector<22x22xf32> to vector<22x16xf32>
    %84 = tpu.concatenate %82, %83 in 1 : vector<22x16xf32>, vector<22x16xf32> -> vector<22x32xf32>
    %c5 = arith.constant 5 : index
    %c0_26 = arith.constant 0 : index
    %c0_27 = arith.constant 0 : index
    %85 = vector.load %arg4[%c5, %c0_26, %c0_27] : memref<7x22x32xf32, #tpu.memory_space<vmem>>, vector<1x22x32xf32>
    %86 = vector.shape_cast %85 : vector<1x22x32xf32> to vector<22x32xf32>
    %87 = vector.shape_cast %84 : vector<22x32xf32> to vector<1x22x32xf32>
    tpu.vector_store %arg4[%c5, %c0_26, %c0_27], %87 {strides = array<i32>} : memref<7x22x32xf32, #tpu.memory_space<vmem>>, vector<1x22x32xf32>,
    %88 = vector.extract_strided_slice %33 {offsets = [0, 6], sizes = [22, 16], strides = [1, 1]} : vector<22x22xf32> to vector<22x16xf32>
    %89 = vector.extract_strided_slice %51 {offsets = [0, 6], sizes = [22, 16], strides = [1, 1]} : vector<22x22xf32> to vector<22x16xf32>
    %90 = tpu.concatenate %88, %89 in 1 : vector<22x16xf32>, vector<22x16xf32> -> vector<22x32xf32>
    %c6 = arith.constant 6 : index
    %c0_28 = arith.constant 0 : index
    %c0_29 = arith.constant 0 : index
    %91 = vector.load %arg4[%c6, %c0_28, %c0_29] : memref<7x22x32xf32, #tpu.memory_space<vmem>>, vector<1x22x32xf32>
    %92 = vector.shape_cast %91 : vector<1x22x32xf32> to vector<22x32xf32>
    %93 = vector.shape_cast %90 : vector<22x32xf32> to vector<1x22x32xf32>
    tpu.vector_store %arg4[%c6, %c0_28, %c0_29], %93 {strides = array<i32>} : memref<7x22x32xf32, #tpu.memory_space<vmem>>, vector<1x22x32xf32>,
    %c49 = arith.constant 49 : index
    %c0_30 = arith.constant 0 : index
    %94 = vector.load %arg1[%c49, %c0_30] : memref<50x32xf32, #tpu.memory_space<vmem>>, vector<1x32xf32>
    %95 = vector.shape_cast %94 : vector<1x32xf32> to vector<32xf32>
    %96 = vector.shape_cast %95 : vector<32xf32> to vector<1x32xf32>
    %97 = vector.broadcast %96 : vector<1x32xf32> to vector<16x32xf32>
    %cst_31 = arith.constant 0.000000e+00 : f32
    %98 = vector.broadcast %cst_31 : f32 to vector<16x32xf32>
    %cst_32 = arith.constant 0.000000e+00 : f32
    %99 = vector.broadcast %cst_32 : f32 to vector<16x32xf32>
    %cst_33 = arith.constant 0.000000e+00 : f32
    %100 = vector.broadcast %cst_33 : f32 to vector<16x32xf32>
    %c0_34 = arith.constant 0 : index
    %c0_35 = arith.constant 0 : index
    %101 = vector.load %arg1[%c0_34, %c0_35] : memref<50x32xf32, #tpu.memory_space<vmem>>, vector<1x32xf32>
    %102 = vector.shape_cast %101 : vector<1x32xf32> to vector<32xf32>
    %c0_36 = arith.constant 0 : index
    %c0_37 = arith.constant 0 : index
    %c0_38 = arith.constant 0 : index
    %103 = vector.load %arg4[%c0_36, %c0_37, %c0_38] : memref<7x22x32xf32, #tpu.memory_space<vmem>>, vector<1x16x32xf32>
    %104 = vector.shape_cast %103 : vector<1x16x32xf32> to vector<16x32xf32>
    %105 = vector.shape_cast %102 : vector<32xf32> to vector<1x32xf32>
    %106 = vector.broadcast %105 : vector<1x32xf32> to vector<16x32xf32>
    %107 = arith.mulf %106, %104 : vector<16x32xf32>
    %108 = arith.addf %97, %107 : vector<16x32xf32>
    %c1_39 = arith.constant 1 : index
    %c0_40 = arith.constant 0 : index
    %109 = vector.load %arg1[%c1_39, %c0_40] : memref<50x32xf32, #tpu.memory_space<vmem>>, vector<1x32xf32>
    %110 = vector.shape_cast %109 : vector<1x32xf32> to vector<32xf32>
    %c1_41 = arith.constant 1 : index
    %c0_42 = arith.constant 0 : index
    %c0_43 = arith.constant 0 : index
    %111 = vector.load %arg4[%c1_41, %c0_42, %c0_43] : memref<7x22x32xf32, #tpu.memory_space<vmem>>, vector<1x16x32xf32>
    %112 = vector.shape_cast %111 : vector<1x16x32xf32> to vector<16x32xf32>
    %113 = vector.shape_cast %110 : vector<32xf32> to vector<1x32xf32>
    %114 = vector.broadcast %113 : vector<1x32xf32> to vector<16x32xf32>
    %115 = arith.mulf %114, %112 : vector<16x32xf32>
    %116 = arith.addf %98, %115 : vector<16x32xf32>
    %c2_44 = arith.constant 2 : index
    %c0_45 = arith.constant 0 : index
    %117 = vector.load %arg1[%c2_44, %c0_45] : memref<50x32xf32, #tpu.memory_space<vmem>>, vector<1x32xf32>
    %118 = vector.shape_cast %117 : vector<1x32xf32> to vector<32xf32>
    %c2_46 = arith.constant 2 : index
    %c0_47 = arith.constant 0 : index
    %c0_48 = arith.constant 0 : index
    %119 = vector.load %arg4[%c2_46, %c0_47, %c0_48] : memref<7x22x32xf32, #tpu.memory_space<vmem>>, vector<1x16x32xf32>
    %120 = vector.shape_cast %119 : vector<1x16x32xf32> to vector<16x32xf32>
    %121 = vector.shape_cast %118 : vector<32xf32> to vector<1x32xf32>
    %122 = vector.broadcast %121 : vector<1x32xf32> to vector<16x32xf32>
    %123 = arith.mulf %122, %120 : vector<16x32xf32>
    %124 = arith.addf %99, %123 : vector<16x32xf32>
    %c3_49 = arith.constant 3 : index
    %c0_50 = arith.constant 0 : index
    %125 = vector.load %arg1[%c3_49, %c0_50] : memref<50x32xf32, #tpu.memory_space<vmem>>, vector<1x32xf32>
    %126 = vector.shape_cast %125 : vector<1x32xf32> to vector<32xf32>
    %c3_51 = arith.constant 3 : index
    %c0_52 = arith.constant 0 : index
    %c0_53 = arith.constant 0 : index
    %127 = vector.load %arg4[%c3_51, %c0_52, %c0_53] : memref<7x22x32xf32, #tpu.memory_space<vmem>>, vector<1x16x32xf32>
    %128 = vector.shape_cast %127 : vector<1x16x32xf32> to vector<16x32xf32>
    %129 = vector.shape_cast %126 : vector<32xf32> to vector<1x32xf32>
    %130 = vector.broadcast %129 : vector<1x32xf32> to vector<16x32xf32>
    %131 = arith.mulf %130, %128 : vector<16x32xf32>
    %132 = arith.addf %100, %131 : vector<16x32xf32>
    %c4_54 = arith.constant 4 : index
    %c0_55 = arith.constant 0 : index
    %133 = vector.load %arg1[%c4_54, %c0_55] : memref<50x32xf32, #tpu.memory_space<vmem>>, vector<1x32xf32>
    %134 = vector.shape_cast %133 : vector<1x32xf32> to vector<32xf32>
    %c4_56 = arith.constant 4 : index
    %c0_57 = arith.constant 0 : index
    %c0_58 = arith.constant 0 : index
    %135 = vector.load %arg4[%c4_56, %c0_57, %c0_58] : memref<7x22x32xf32, #tpu.memory_space<vmem>>, vector<1x16x32xf32>
    %136 = vector.shape_cast %135 : vector<1x16x32xf32> to vector<16x32xf32>
    %137 = vector.shape_cast %134 : vector<32xf32> to vector<1x32xf32>
    %138 = vector.broadcast %137 : vector<1x32xf32> to vector<16x32xf32>
    %139 = arith.mulf %138, %136 : vector<16x32xf32>
    %140 = arith.addf %108, %139 : vector<16x32xf32>
    %c5_59 = arith.constant 5 : index
    %c0_60 = arith.constant 0 : index
    %141 = vector.load %arg1[%c5_59, %c0_60] : memref<50x32xf32, #tpu.memory_space<vmem>>, vector<1x32xf32>
    %142 = vector.shape_cast %141 : vector<1x32xf32> to vector<32xf32>
    %c5_61 = arith.constant 5 : index
    %c0_62 = arith.constant 0 : index
    %c0_63 = arith.constant 0 : index
    %143 = vector.load %arg4[%c5_61, %c0_62, %c0_63] : memref<7x22x32xf32, #tpu.memory_space<vmem>>, vector<1x16x32xf32>
    %144 = vector.shape_cast %143 : vector<1x16x32xf32> to vector<16x32xf32>
    %145 = vector.shape_cast %142 : vector<32xf32> to vector<1x32xf32>
    %146 = vector.broadcast %145 : vector<1x32xf32> to vector<16x32xf32>
    %147 = arith.mulf %146, %144 : vector<16x32xf32>
    %148 = arith.addf %116, %147 : vector<16x32xf32>
    %c6_64 = arith.constant 6 : index
    %c0_65 = arith.constant 0 : index
    %149 = vector.load %arg1[%c6_64, %c0_65] : memref<50x32xf32, #tpu.memory_space<vmem>>, vector<1x32xf32>
    %150 = vector.shape_cast %149 : vector<1x32xf32> to vector<32xf32>
    %c6_66 = arith.constant 6 : index
    %c0_67 = arith.constant 0 : index
    %c0_68 = arith.constant 0 : index
    %151 = vector.load %arg4[%c6_66, %c0_67, %c0_68] : memref<7x22x32xf32, #tpu.memory_space<vmem>>, vector<1x16x32xf32>
    %152 = vector.shape_cast %151 : vector<1x16x32xf32> to vector<16x32xf32>
    %153 = vector.shape_cast %150 : vector<32xf32> to vector<1x32xf32>
    %154 = vector.broadcast %153 : vector<1x32xf32> to vector<16x32xf32>
    %155 = arith.mulf %154, %152 : vector<16x32xf32>
    %156 = arith.addf %124, %155 : vector<16x32xf32>
    %c7 = arith.constant 7 : index
    %c0_69 = arith.constant 0 : index
    %157 = vector.load %arg1[%c7, %c0_69] : memref<50x32xf32, #tpu.memory_space<vmem>>, vector<1x32xf32>
    %158 = vector.shape_cast %157 : vector<1x32xf32> to vector<32xf32>
    %c0_70 = arith.constant 0 : index
    %c1_71 = arith.constant 1 : index
    %c0_72 = arith.constant 0 : index
    %159 = vector.load %arg4[%c0_70, %c1_71, %c0_72] : memref<7x22x32xf32, #tpu.memory_space<vmem>>, vector<1x16x32xf32>
    %160 = vector.shape_cast %159 : vector<1x16x32xf32> to vector<16x32xf32>
    %161 = vector.shape_cast %158 : vector<32xf32> to vector<1x32xf32>
    %162 = vector.broadcast %161 : vector<1x32xf32> to vector<16x32xf32>
    %163 = arith.mulf %162, %160 : vector<16x32xf32>
    %164 = arith.addf %132, %163 : vector<16x32xf32>
    %c8 = arith.constant 8 : index
    %c0_73 = arith.constant 0 : index
    %165 = vector.load %arg1[%c8, %c0_73] : memref<50x32xf32, #tpu.memory_space<vmem>>, vector<1x32xf32>
    %166 = vector.shape_cast %165 : vector<1x32xf32> to vector<32xf32>
    %c1_74 = arith.constant 1 : index
    %c1_75 = arith.constant 1 : index
    %c0_76 = arith.constant 0 : index
    %167 = vector.load %arg4[%c1_74, %c1_75, %c0_76] : memref<7x22x32xf32, #tpu.memory_space<vmem>>, vector<1x16x32xf32>
    %168 = vector.shape_cast %167 : vector<1x16x32xf32> to vector<16x32xf32>
    %169 = vector.shape_cast %166 : vector<32xf32> to vector<1x32xf32>
    %170 = vector.broadcast %169 : vector<1x32xf32> to vector<16x32xf32>
    %171 = arith.mulf %170, %168 : vector<16x32xf32>
    %172 = arith.addf %140, %171 : vector<16x32xf32>
    %c9 = arith.constant 9 : index
    %c0_77 = arith.constant 0 : index
    %173 = vector.load %arg1[%c9, %c0_77] : memref<50x32xf32, #tpu.memory_space<vmem>>, vector<1x32xf32>
    %174 = vector.shape_cast %173 : vector<1x32xf32> to vector<32xf32>
    %c2_78 = arith.constant 2 : index
    %c1_79 = arith.constant 1 : index
    %c0_80 = arith.constant 0 : index
    %175 = vector.load %arg4[%c2_78, %c1_79, %c0_80] : memref<7x22x32xf32, #tpu.memory_space<vmem>>, vector<1x16x32xf32>
    %176 = vector.shape_cast %175 : vector<1x16x32xf32> to vector<16x32xf32>
    %177 = vector.shape_cast %174 : vector<32xf32> to vector<1x32xf32>
    %178 = vector.broadcast %177 : vector<1x32xf32> to vector<16x32xf32>
    %179 = arith.mulf %178, %176 : vector<16x32xf32>
    %180 = arith.addf %148, %179 : vector<16x32xf32>
    %c10 = arith.constant 10 : index
    %c0_81 = arith.constant 0 : index
    %181 = vector.load %arg1[%c10, %c0_81] : memref<50x32xf32, #tpu.memory_space<vmem>>, vector<1x32xf32>
    %182 = vector.shape_cast %181 : vector<1x32xf32> to vector<32xf32>
    %c3_82 = arith.constant 3 : index
    %c1_83 = arith.constant 1 : index
    %c0_84 = arith.constant 0 : index
    %183 = vector.load %arg4[%c3_82, %c1_83, %c0_84] : memref<7x22x32xf32, #tpu.memory_space<vmem>>, vector<1x16x32xf32>
    %184 = vector.shape_cast %183 : vector<1x16x32xf32> to vector<16x32xf32>
    %185 = vector.shape_cast %182 : vector<32xf32> to vector<1x32xf32>
    %186 = vector.broadcast %185 : vector<1x32xf32> to vector<16x32xf32>
    %187 = arith.mulf %186, %184 : vector<16x32xf32>
    %188 = arith.addf %156, %187 : vector<16x32xf32>
    %c11 = arith.constant 11 : index
    %c0_85 = arith.constant 0 : index
    %189 = vector.load %arg1[%c11, %c0_85] : memref<50x32xf32, #tpu.memory_space<vmem>>, vector<1x32xf32>
    %190 = vector.shape_cast %189 : vector<1x32xf32> to vector<32xf32>
    %c4_86 = arith.constant 4 : index
    %c1_87 = arith.constant 1 : index
    %c0_88 = arith.constant 0 : index
    %191 = vector.load %arg4[%c4_86, %c1_87, %c0_88] : memref<7x22x32xf32, #tpu.memory_space<vmem>>, vector<1x16x32xf32>
    %192 = vector.shape_cast %191 : vector<1x16x32xf32> to vector<16x32xf32>
    %193 = vector.shape_cast %190 : vector<32xf32> to vector<1x32xf32>
    %194 = vector.broadcast %193 : vector<1x32xf32> to vector<16x32xf32>
    %195 = arith.mulf %194, %192 : vector<16x32xf32>
    %196 = arith.addf %164, %195 : vector<16x32xf32>
    %c12 = arith.constant 12 : index
    %c0_89 = arith.constant 0 : index
    %197 = vector.load %arg1[%c12, %c0_89] : memref<50x32xf32, #tpu.memory_space<vmem>>, vector<1x32xf32>
    %198 = vector.shape_cast %197 : vector<1x32xf32> to vector<32xf32>
    %c5_90 = arith.constant 5 : index
    %c1_91 = arith.constant 1 : index
    %c0_92 = arith.constant 0 : index
    %199 = vector.load %arg4[%c5_90, %c1_91, %c0_92] : memref<7x22x32xf32, #tpu.memory_space<vmem>>, vector<1x16x32xf32>
    %200 = vector.shape_cast %199 : vector<1x16x32xf32> to vector<16x32xf32>
    %201 = vector.shape_cast %198 : vector<32xf32> to vector<1x32xf32>
    %202 = vector.broadcast %201 : vector<1x32xf32> to vector<16x32xf32>
    %203 = arith.mulf %202, %200 : vector<16x32xf32>
    %204 = arith.addf %172, %203 : vector<16x32xf32>
    %c13 = arith.constant 13 : index
    %c0_93 = arith.constant 0 : index
    %205 = vector.load %arg1[%c13, %c0_93] : memref<50x32xf32, #tpu.memory_space<vmem>>, vector<1x32xf32>
    %206 = vector.shape_cast %205 : vector<1x32xf32> to vector<32xf32>
    %c6_94 = arith.constant 6 : index
    %c1_95 = arith.constant 1 : index
    %c0_96 = arith.constant 0 : index
    %207 = vector.load %arg4[%c6_94, %c1_95, %c0_96] : memref<7x22x32xf32, #tpu.memory_space<vmem>>, vector<1x16x32xf32>
    %208 = vector.shape_cast %207 : vector<1x16x32xf32> to vector<16x32xf32>
    %209 = vector.shape_cast %206 : vector<32xf32> to vector<1x32xf32>
    %210 = vector.broadcast %209 : vector<1x32xf32> to vector<16x32xf32>
    %211 = arith.mulf %210, %208 : vector<16x32xf32>
    %212 = arith.addf %180, %211 : vector<16x32xf32>
    %c14 = arith.constant 14 : index
    %c0_97 = arith.constant 0 : index
    %213 = vector.load %arg1[%c14, %c0_97] : memref<50x32xf32, #tpu.memory_space<vmem>>, vector<1x32xf32>
    %214 = vector.shape_cast %213 : vector<1x32xf32> to vector<32xf32>
    %c0_98 = arith.constant 0 : index
    %c2_99 = arith.constant 2 : index
    %c0_100 = arith.constant 0 : index
    %215 = vector.load %arg4[%c0_98, %c2_99, %c0_100] : memref<7x22x32xf32, #tpu.memory_space<vmem>>, vector<1x16x32xf32>
    %216 = vector.shape_cast %215 : vector<1x16x32xf32> to vector<16x32xf32>
    %217 = vector.shape_cast %214 : vector<32xf32> to vector<1x32xf32>
    %218 = vector.broadcast %217 : vector<1x32xf32> to vector<16x32xf32>
    %219 = arith.mulf %218, %216 : vector<16x32xf32>
    %220 = arith.addf %188, %219 : vector<16x32xf32>
    %c15 = arith.constant 15 : index
    %c0_101 = arith.constant 0 : index
    %221 = vector.load %arg1[%c15, %c0_101] : memref<50x32xf32, #tpu.memory_space<vmem>>, vector<1x32xf32>
    %222 = vector.shape_cast %221 : vector<1x32xf32> to vector<32xf32>
    %c1_102 = arith.constant 1 : index
    %c2_103 = arith.constant 2 : index
    %c0_104 = arith.constant 0 : index
    %223 = vector.load %arg4[%c1_102, %c2_103, %c0_104] : memref<7x22x32xf32, #tpu.memory_space<vmem>>, vector<1x16x32xf32>
    %224 = vector.shape_cast %223 : vector<1x16x32xf32> to vector<16x32xf32>
    %225 = vector.shape_cast %222 : vector<32xf32> to vector<1x32xf32>
    %226 = vector.broadcast %225 : vector<1x32xf32> to vector<16x32xf32>
    %227 = arith.mulf %226, %224 : vector<16x32xf32>
    %228 = arith.addf %196, %227 : vector<16x32xf32>
    %c16 = arith.constant 16 : index
    %c0_105 = arith.constant 0 : index
    %229 = vector.load %arg1[%c16, %c0_105] : memref<50x32xf32, #tpu.memory_space<vmem>>, vector<1x32xf32>
    %230 = vector.shape_cast %229 : vector<1x32xf32> to vector<32xf32>
    %c2_106 = arith.constant 2 : index
    %c2_107 = arith.constant 2 : index
    %c0_108 = arith.constant 0 : index
    %231 = vector.load %arg4[%c2_106, %c2_107, %c0_108] : memref<7x22x32xf32, #tpu.memory_space<vmem>>, vector<1x16x32xf32>
    %232 = vector.shape_cast %231 : vector<1x16x32xf32> to vector<16x32xf32>
    %233 = vector.shape_cast %230 : vector<32xf32> to vector<1x32xf32>
    %234 = vector.broadcast %233 : vector<1x32xf32> to vector<16x32xf32>
    %235 = arith.mulf %234, %232 : vector<16x32xf32>
    %236 = arith.addf %204, %235 : vector<16x32xf32>
    %c17 = arith.constant 17 : index
    %c0_109 = arith.constant 0 : index
    %237 = vector.load %arg1[%c17, %c0_109] : memref<50x32xf32, #tpu.memory_space<vmem>>, vector<1x32xf32>
    %238 = vector.shape_cast %237 : vector<1x32xf32> to vector<32xf32>
    %c3_110 = arith.constant 3 : index
    %c2_111 = arith.constant 2 : index
    %c0_112 = arith.constant 0 : index
    %239 = vector.load %arg4[%c3_110, %c2_111, %c0_112] : memref<7x22x32xf32, #tpu.memory_space<vmem>>, vector<1x16x32xf32>
    %240 = vector.shape_cast %239 : vector<1x16x32xf32> to vector<16x32xf32>
    %241 = vector.shape_cast %238 : vector<32xf32> to vector<1x32xf32>
    %242 = vector.broadcast %241 : vector<1x32xf32> to vector<16x32xf32>
    %243 = arith.mulf %242, %240 : vector<16x32xf32>
    %244 = arith.addf %212, %243 : vector<16x32xf32>
    %c18 = arith.constant 18 : index
    %c0_113 = arith.constant 0 : index
    %245 = vector.load %arg1[%c18, %c0_113] : memref<50x32xf32, #tpu.memory_space<vmem>>, vector<1x32xf32>
    %246 = vector.shape_cast %245 : vector<1x32xf32> to vector<32xf32>
    %c4_114 = arith.constant 4 : index
    %c2_115 = arith.constant 2 : index
    %c0_116 = arith.constant 0 : index
    %247 = vector.load %arg4[%c4_114, %c2_115, %c0_116] : memref<7x22x32xf32, #tpu.memory_space<vmem>>, vector<1x16x32xf32>
    %248 = vector.shape_cast %247 : vector<1x16x32xf32> to vector<16x32xf32>
    %249 = vector.shape_cast %246 : vector<32xf32> to vector<1x32xf32>
    %250 = vector.broadcast %249 : vector<1x32xf32> to vector<16x32xf32>
    %251 = arith.mulf %250, %248 : vector<16x32xf32>
    %252 = arith.addf %220, %251 : vector<16x32xf32>
    %c19 = arith.constant 19 : index
    %c0_117 = arith.constant 0 : index
    %253 = vector.load %arg1[%c19, %c0_117] : memref<50x32xf32, #tpu.memory_space<vmem>>, vector<1x32xf32>
    %254 = vector.shape_cast %253 : vector<1x32xf32> to vector<32xf32>
    %c5_118 = arith.constant 5 : index
    %c2_119 = arith.constant 2 : index
    %c0_120 = arith.constant 0 : index
    %255 = vector.load %arg4[%c5_118, %c2_119, %c0_120] : memref<7x22x32xf32, #tpu.memory_space<vmem>>, vector<1x16x32xf32>
    %256 = vector.shape_cast %255 : vector<1x16x32xf32> to vector<16x32xf32>
    %257 = vector.shape_cast %254 : vector<32xf32> to vector<1x32xf32>
    %258 = vector.broadcast %257 : vector<1x32xf32> to vector<16x32xf32>
    %259 = arith.mulf %258, %256 : vector<16x32xf32>
    %260 = arith.addf %228, %259 : vector<16x32xf32>
    %c20 = arith.constant 20 : index
    %c0_121 = arith.constant 0 : index
    %261 = vector.load %arg1[%c20, %c0_121] : memref<50x32xf32, #tpu.memory_space<vmem>>, vector<1x32xf32>
    %262 = vector.shape_cast %261 : vector<1x32xf32> to vector<32xf32>
    %c6_122 = arith.constant 6 : index
    %c2_123 = arith.constant 2 : index
    %c0_124 = arith.constant 0 : index
    %263 = vector.load %arg4[%c6_122, %c2_123, %c0_124] : memref<7x22x32xf32, #tpu.memory_space<vmem>>, vector<1x16x32xf32>
    %264 = vector.shape_cast %263 : vector<1x16x32xf32> to vector<16x32xf32>
    %265 = vector.shape_cast %262 : vector<32xf32> to vector<1x32xf32>
    %266 = vector.broadcast %265 : vector<1x32xf32> to vector<16x32xf32>
    %267 = arith.mulf %266, %264 : vector<16x32xf32>
    %268 = arith.addf %236, %267 : vector<16x32xf32>
    %c21 = arith.constant 21 : index
    %c0_125 = arith.constant 0 : index
    %269 = vector.load %arg1[%c21, %c0_125] : memref<50x32xf32, #tpu.memory_space<vmem>>, vector<1x32xf32>
    %270 = vector.shape_cast %269 : vector<1x32xf32> to vector<32xf32>
    %c0_126 = arith.constant 0 : index
    %c3_127 = arith.constant 3 : index
    %c0_128 = arith.constant 0 : index
    %271 = vector.load %arg4[%c0_126, %c3_127, %c0_128] : memref<7x22x32xf32, #tpu.memory_space<vmem>>, vector<1x16x32xf32>
    %272 = vector.shape_cast %271 : vector<1x16x32xf32> to vector<16x32xf32>
    %273 = vector.shape_cast %270 : vector<32xf32> to vector<1x32xf32>
    %274 = vector.broadcast %273 : vector<1x32xf32> to vector<16x32xf32>
    %275 = arith.mulf %274, %272 : vector<16x32xf32>
    %276 = arith.addf %244, %275 : vector<16x32xf32>
    %c22 = arith.constant 22 : index
    %c0_129 = arith.constant 0 : index
    %277 = vector.load %arg1[%c22, %c0_129] : memref<50x32xf32, #tpu.memory_space<vmem>>, vector<1x32xf32>
    %278 = vector.shape_cast %277 : vector<1x32xf32> to vector<32xf32>
    %c1_130 = arith.constant 1 : index
    %c3_131 = arith.constant 3 : index
    %c0_132 = arith.constant 0 : index
    %279 = vector.load %arg4[%c1_130, %c3_131, %c0_132] : memref<7x22x32xf32, #tpu.memory_space<vmem>>, vector<1x16x32xf32>
    %280 = vector.shape_cast %279 : vector<1x16x32xf32> to vector<16x32xf32>
    %281 = vector.shape_cast %278 : vector<32xf32> to vector<1x32xf32>
    %282 = vector.broadcast %281 : vector<1x32xf32> to vector<16x32xf32>
    %283 = arith.mulf %282, %280 : vector<16x32xf32>
    %284 = arith.addf %252, %283 : vector<16x32xf32>
    %c23 = arith.constant 23 : index
    %c0_133 = arith.constant 0 : index
    %285 = vector.load %arg1[%c23, %c0_133] : memref<50x32xf32, #tpu.memory_space<vmem>>, vector<1x32xf32>
    %286 = vector.shape_cast %285 : vector<1x32xf32> to vector<32xf32>
    %c2_134 = arith.constant 2 : index
    %c3_135 = arith.constant 3 : index
    %c0_136 = arith.constant 0 : index
    %287 = vector.load %arg4[%c2_134, %c3_135, %c0_136] : memref<7x22x32xf32, #tpu.memory_space<vmem>>, vector<1x16x32xf32>
    %288 = vector.shape_cast %287 : vector<1x16x32xf32> to vector<16x32xf32>
    %289 = vector.shape_cast %286 : vector<32xf32> to vector<1x32xf32>
    %290 = vector.broadcast %289 : vector<1x32xf32> to vector<16x32xf32>
    %291 = arith.mulf %290, %288 : vector<16x32xf32>
    %292 = arith.addf %260, %291 : vector<16x32xf32>
    %c24 = arith.constant 24 : index
    %c0_137 = arith.constant 0 : index
    %293 = vector.load %arg1[%c24, %c0_137] : memref<50x32xf32, #tpu.memory_space<vmem>>, vector<1x32xf32>
    %294 = vector.shape_cast %293 : vector<1x32xf32> to vector<32xf32>
    %c3_138 = arith.constant 3 : index
    %c3_139 = arith.constant 3 : index
    %c0_140 = arith.constant 0 : index
    %295 = vector.load %arg4[%c3_138, %c3_139, %c0_140] : memref<7x22x32xf32, #tpu.memory_space<vmem>>, vector<1x16x32xf32>
    %296 = vector.shape_cast %295 : vector<1x16x32xf32> to vector<16x32xf32>
    %297 = vector.shape_cast %294 : vector<32xf32> to vector<1x32xf32>
    %298 = vector.broadcast %297 : vector<1x32xf32> to vector<16x32xf32>
    %299 = arith.mulf %298, %296 : vector<16x32xf32>
    %300 = arith.addf %268, %299 : vector<16x32xf32>
    %c25 = arith.constant 25 : index
    %c0_141 = arith.constant 0 : index
    %301 = vector.load %arg1[%c25, %c0_141] : memref<50x32xf32, #tpu.memory_space<vmem>>, vector<1x32xf32>
    %302 = vector.shape_cast %301 : vector<1x32xf32> to vector<32xf32>
    %c4_142 = arith.constant 4 : index
    %c3_143 = arith.constant 3 : index
    %c0_144 = arith.constant 0 : index
    %303 = vector.load %arg4[%c4_142, %c3_143, %c0_144] : memref<7x22x32xf32, #tpu.memory_space<vmem>>, vector<1x16x32xf32>
    %304 = vector.shape_cast %303 : vector<1x16x32xf32> to vector<16x32xf32>
    %305 = vector.shape_cast %302 : vector<32xf32> to vector<1x32xf32>
    %306 = vector.broadcast %305 : vector<1x32xf32> to vector<16x32xf32>
    %307 = arith.mulf %306, %304 : vector<16x32xf32>
    %308 = arith.addf %276, %307 : vector<16x32xf32>
    %c26 = arith.constant 26 : index
    %c0_145 = arith.constant 0 : index
    %309 = vector.load %arg1[%c26, %c0_145] : memref<50x32xf32, #tpu.memory_space<vmem>>, vector<1x32xf32>
    %310 = vector.shape_cast %309 : vector<1x32xf32> to vector<32xf32>
    %c5_146 = arith.constant 5 : index
    %c3_147 = arith.constant 3 : index
    %c0_148 = arith.constant 0 : index
    %311 = vector.load %arg4[%c5_146, %c3_147, %c0_148] : memref<7x22x32xf32, #tpu.memory_space<vmem>>, vector<1x16x32xf32>
    %312 = vector.shape_cast %311 : vector<1x16x32xf32> to vector<16x32xf32>
    %313 = vector.shape_cast %310 : vector<32xf32> to vector<1x32xf32>
    %314 = vector.broadcast %313 : vector<1x32xf32> to vector<16x32xf32>
    %315 = arith.mulf %314, %312 : vector<16x32xf32>
    %316 = arith.addf %284, %315 : vector<16x32xf32>
    %c27 = arith.constant 27 : index
    %c0_149 = arith.constant 0 : index
    %317 = vector.load %arg1[%c27, %c0_149] : memref<50x32xf32, #tpu.memory_space<vmem>>, vector<1x32xf32>
    %318 = vector.shape_cast %317 : vector<1x32xf32> to vector<32xf32>
    %c6_150 = arith.constant 6 : index
    %c3_151 = arith.constant 3 : index
    %c0_152 = arith.constant 0 : index
    %319 = vector.load %arg4[%c6_150, %c3_151, %c0_152] : memref<7x22x32xf32, #tpu.memory_space<vmem>>, vector<1x16x32xf32>
    %320 = vector.shape_cast %319 : vector<1x16x32xf32> to vector<16x32xf32>
    %321 = vector.shape_cast %318 : vector<32xf32> to vector<1x32xf32>
    %322 = vector.broadcast %321 : vector<1x32xf32> to vector<16x32xf32>
    %323 = arith.mulf %322, %320 : vector<16x32xf32>
    %324 = arith.addf %292, %323 : vector<16x32xf32>
    %c28 = arith.constant 28 : index
    %c0_153 = arith.constant 0 : index
    %325 = vector.load %arg1[%c28, %c0_153] : memref<50x32xf32, #tpu.memory_space<vmem>>, vector<1x32xf32>
    %326 = vector.shape_cast %325 : vector<1x32xf32> to vector<32xf32>
    %c0_154 = arith.constant 0 : index
    %c4_155 = arith.constant 4 : index
    %c0_156 = arith.constant 0 : index
    %327 = vector.load %arg4[%c0_154, %c4_155, %c0_156] : memref<7x22x32xf32, #tpu.memory_space<vmem>>, vector<1x16x32xf32>
    %328 = vector.shape_cast %327 : vector<1x16x32xf32> to vector<16x32xf32>
    %329 = vector.shape_cast %326 : vector<32xf32> to vector<1x32xf32>
    %330 = vector.broadcast %329 : vector<1x32xf32> to vector<16x32xf32>
    %331 = arith.mulf %330, %328 : vector<16x32xf32>
    %332 = arith.addf %300, %331 : vector<16x32xf32>
    %c29 = arith.constant 29 : index
    %c0_157 = arith.constant 0 : index
    %333 = vector.load %arg1[%c29, %c0_157] : memref<50x32xf32, #tpu.memory_space<vmem>>, vector<1x32xf32>
    %334 = vector.shape_cast %333 : vector<1x32xf32> to vector<32xf32>
    %c1_158 = arith.constant 1 : index
    %c4_159 = arith.constant 4 : index
    %c0_160 = arith.constant 0 : index
    %335 = vector.load %arg4[%c1_158, %c4_159, %c0_160] : memref<7x22x32xf32, #tpu.memory_space<vmem>>, vector<1x16x32xf32>
    %336 = vector.shape_cast %335 : vector<1x16x32xf32> to vector<16x32xf32>
    %337 = vector.shape_cast %334 : vector<32xf32> to vector<1x32xf32>
    %338 = vector.broadcast %337 : vector<1x32xf32> to vector<16x32xf32>
    %339 = arith.mulf %338, %336 : vector<16x32xf32>
    %340 = arith.addf %308, %339 : vector<16x32xf32>
    %c30 = arith.constant 30 : index
    %c0_161 = arith.constant 0 : index
    %341 = vector.load %arg1[%c30, %c0_161] : memref<50x32xf32, #tpu.memory_space<vmem>>, vector<1x32xf32>
    %342 = vector.shape_cast %341 : vector<1x32xf32> to vector<32xf32>
    %c2_162 = arith.constant 2 : index
    %c4_163 = arith.constant 4 : index
    %c0_164 = arith.constant 0 : index
    %343 = vector.load %arg4[%c2_162, %c4_163, %c0_164] : memref<7x22x32xf32, #tpu.memory_space<vmem>>, vector<1x16x32xf32>
    %344 = vector.shape_cast %343 : vector<1x16x32xf32> to vector<16x32xf32>
    %345 = vector.shape_cast %342 : vector<32xf32> to vector<1x32xf32>
    %346 = vector.broadcast %345 : vector<1x32xf32> to vector<16x32xf32>
    %347 = arith.mulf %346, %344 : vector<16x32xf32>
    %348 = arith.addf %316, %347 : vector<16x32xf32>
    %c31 = arith.constant 31 : index
    %c0_165 = arith.constant 0 : index
    %349 = vector.load %arg1[%c31, %c0_165] : memref<50x32xf32, #tpu.memory_space<vmem>>, vector<1x32xf32>
    %350 = vector.shape_cast %349 : vector<1x32xf32> to vector<32xf32>
    %c3_166 = arith.constant 3 : index
    %c4_167 = arith.constant 4 : index
    %c0_168 = arith.constant 0 : index
    %351 = vector.load %arg4[%c3_166, %c4_167, %c0_168] : memref<7x22x32xf32, #tpu.memory_space<vmem>>, vector<1x16x32xf32>
    %352 = vector.shape_cast %351 : vector<1x16x32xf32> to vector<16x32xf32>
    %353 = vector.shape_cast %350 : vector<32xf32> to vector<1x32xf32>
    %354 = vector.broadcast %353 : vector<1x32xf32> to vector<16x32xf32>
    %355 = arith.mulf %354, %352 : vector<16x32xf32>
    %356 = arith.addf %324, %355 : vector<16x32xf32>
    %c32 = arith.constant 32 : index
    %c0_169 = arith.constant 0 : index
    %357 = vector.load %arg1[%c32, %c0_169] : memref<50x32xf32, #tpu.memory_space<vmem>>, vector<1x32xf32>
    %358 = vector.shape_cast %357 : vector<1x32xf32> to vector<32xf32>
    %c4_170 = arith.constant 4 : index
    %c4_171 = arith.constant 4 : index
    %c0_172 = arith.constant 0 : index
    %359 = vector.load %arg4[%c4_170, %c4_171, %c0_172] : memref<7x22x32xf32, #tpu.memory_space<vmem>>, vector<1x16x32xf32>
    %360 = vector.shape_cast %359 : vector<1x16x32xf32> to vector<16x32xf32>
    %361 = vector.shape_cast %358 : vector<32xf32> to vector<1x32xf32>
    %362 = vector.broadcast %361 : vector<1x32xf32> to vector<16x32xf32>
    %363 = arith.mulf %362, %360 : vector<16x32xf32>
    %364 = arith.addf %332, %363 : vector<16x32xf32>
    %c33 = arith.constant 33 : index
    %c0_173 = arith.constant 0 : index
    %365 = vector.load %arg1[%c33, %c0_173] : memref<50x32xf32, #tpu.memory_space<vmem>>, vector<1x32xf32>
    %366 = vector.shape_cast %365 : vector<1x32xf32> to vector<32xf32>
    %c5_174 = arith.constant 5 : index
    %c4_175 = arith.constant 4 : index
    %c0_176 = arith.constant 0 : index
    %367 = vector.load %arg4[%c5_174, %c4_175, %c0_176] : memref<7x22x32xf32, #tpu.memory_space<vmem>>, vector<1x16x32xf32>
    %368 = vector.shape_cast %367 : vector<1x16x32xf32> to vector<16x32xf32>
    %369 = vector.shape_cast %366 : vector<32xf32> to vector<1x32xf32>
    %370 = vector.broadcast %369 : vector<1x32xf32> to vector<16x32xf32>
    %371 = arith.mulf %370, %368 : vector<16x32xf32>
    %372 = arith.addf %340, %371 : vector<16x32xf32>
    %c34 = arith.constant 34 : index
    %c0_177 = arith.constant 0 : index
    %373 = vector.load %arg1[%c34, %c0_177] : memref<50x32xf32, #tpu.memory_space<vmem>>, vector<1x32xf32>
    %374 = vector.shape_cast %373 : vector<1x32xf32> to vector<32xf32>
    %c6_178 = arith.constant 6 : index
    %c4_179 = arith.constant 4 : index
    %c0_180 = arith.constant 0 : index
    %375 = vector.load %arg4[%c6_178, %c4_179, %c0_180] : memref<7x22x32xf32, #tpu.memory_space<vmem>>, vector<1x16x32xf32>
    %376 = vector.shape_cast %375 : vector<1x16x32xf32> to vector<16x32xf32>
    %377 = vector.shape_cast %374 : vector<32xf32> to vector<1x32xf32>
    %378 = vector.broadcast %377 : vector<1x32xf32> to vector<16x32xf32>
    %379 = arith.mulf %378, %376 : vector<16x32xf32>
    %380 = arith.addf %348, %379 : vector<16x32xf32>
    %c35 = arith.constant 35 : index
    %c0_181 = arith.constant 0 : index
    %381 = vector.load %arg1[%c35, %c0_181] : memref<50x32xf32, #tpu.memory_space<vmem>>, vector<1x32xf32>
    %382 = vector.shape_cast %381 : vector<1x32xf32> to vector<32xf32>
    %c0_182 = arith.constant 0 : index
    %c5_183 = arith.constant 5 : index
    %c0_184 = arith.constant 0 : index
    %383 = vector.load %arg4[%c0_182, %c5_183, %c0_184] : memref<7x22x32xf32, #tpu.memory_space<vmem>>, vector<1x16x32xf32>
    %384 = vector.shape_cast %383 : vector<1x16x32xf32> to vector<16x32xf32>
    %385 = vector.shape_cast %382 : vector<32xf32> to vector<1x32xf32>
    %386 = vector.broadcast %385 : vector<1x32xf32> to vector<16x32xf32>
    %387 = arith.mulf %386, %384 : vector<16x32xf32>
    %388 = arith.addf %356, %387 : vector<16x32xf32>
    %c36 = arith.constant 36 : index
    %c0_185 = arith.constant 0 : index
    %389 = vector.load %arg1[%c36, %c0_185] : memref<50x32xf32, #tpu.memory_space<vmem>>, vector<1x32xf32>
    %390 = vector.shape_cast %389 : vector<1x32xf32> to vector<32xf32>
    %c1_186 = arith.constant 1 : index
    %c5_187 = arith.constant 5 : index
    %c0_188 = arith.constant 0 : index
    %391 = vector.load %arg4[%c1_186, %c5_187, %c0_188] : memref<7x22x32xf32, #tpu.memory_space<vmem>>, vector<1x16x32xf32>
    %392 = vector.shape_cast %391 : vector<1x16x32xf32> to vector<16x32xf32>
    %393 = vector.shape_cast %390 : vector<32xf32> to vector<1x32xf32>
    %394 = vector.broadcast %393 : vector<1x32xf32> to vector<16x32xf32>
    %395 = arith.mulf %394, %392 : vector<16x32xf32>
    %396 = arith.addf %364, %395 : vector<16x32xf32>
    %c37 = arith.constant 37 : index
    %c0_189 = arith.constant 0 : index
    %397 = vector.load %arg1[%c37, %c0_189] : memref<50x32xf32, #tpu.memory_space<vmem>>, vector<1x32xf32>
    %398 = vector.shape_cast %397 : vector<1x32xf32> to vector<32xf32>
    %c2_190 = arith.constant 2 : index
    %c5_191 = arith.constant 5 : index
    %c0_192 = arith.constant 0 : index
    %399 = vector.load %arg4[%c2_190, %c5_191, %c0_192] : memref<7x22x32xf32, #tpu.memory_space<vmem>>, vector<1x16x32xf32>
    %400 = vector.shape_cast %399 : vector<1x16x32xf32> to vector<16x32xf32>
    %401 = vector.shape_cast %398 : vector<32xf32> to vector<1x32xf32>
    %402 = vector.broadcast %401 : vector<1x32xf32> to vector<16x32xf32>
    %403 = arith.mulf %402, %400 : vector<16x32xf32>
    %404 = arith.addf %372, %403 : vector<16x32xf32>
    %c38 = arith.constant 38 : index
    %c0_193 = arith.constant 0 : index
    %405 = vector.load %arg1[%c38, %c0_193] : memref<50x32xf32, #tpu.memory_space<vmem>>, vector<1x32xf32>
    %406 = vector.shape_cast %405 : vector<1x32xf32> to vector<32xf32>
    %c3_194 = arith.constant 3 : index
    %c5_195 = arith.constant 5 : index
    %c0_196 = arith.constant 0 : index
    %407 = vector.load %arg4[%c3_194, %c5_195, %c0_196] : memref<7x22x32xf32, #tpu.memory_space<vmem>>, vector<1x16x32xf32>
    %408 = vector.shape_cast %407 : vector<1x16x32xf32> to vector<16x32xf32>
    %409 = vector.shape_cast %406 : vector<32xf32> to vector<1x32xf32>
    %410 = vector.broadcast %409 : vector<1x32xf32> to vector<16x32xf32>
    %411 = arith.mulf %410, %408 : vector<16x32xf32>
    %412 = arith.addf %380, %411 : vector<16x32xf32>
    %c39 = arith.constant 39 : index
    %c0_197 = arith.constant 0 : index
    %413 = vector.load %arg1[%c39, %c0_197] : memref<50x32xf32, #tpu.memory_space<vmem>>, vector<1x32xf32>
    %414 = vector.shape_cast %413 : vector<1x32xf32> to vector<32xf32>
    %c4_198 = arith.constant 4 : index
    %c5_199 = arith.constant 5 : index
    %c0_200 = arith.constant 0 : index
    %415 = vector.load %arg4[%c4_198, %c5_199, %c0_200] : memref<7x22x32xf32, #tpu.memory_space<vmem>>, vector<1x16x32xf32>
    %416 = vector.shape_cast %415 : vector<1x16x32xf32> to vector<16x32xf32>
    %417 = vector.shape_cast %414 : vector<32xf32> to vector<1x32xf32>
    %418 = vector.broadcast %417 : vector<1x32xf32> to vector<16x32xf32>
    %419 = arith.mulf %418, %416 : vector<16x32xf32>
    %420 = arith.addf %388, %419 : vector<16x32xf32>
    %c40 = arith.constant 40 : index
    %c0_201 = arith.constant 0 : index
    %421 = vector.load %arg1[%c40, %c0_201] : memref<50x32xf32, #tpu.memory_space<vmem>>, vector<1x32xf32>
    %422 = vector.shape_cast %421 : vector<1x32xf32> to vector<32xf32>
    %c5_202 = arith.constant 5 : index
    %c5_203 = arith.constant 5 : index
    %c0_204 = arith.constant 0 : index
    %423 = vector.load %arg4[%c5_202, %c5_203, %c0_204] : memref<7x22x32xf32, #tpu.memory_space<vmem>>, vector<1x16x32xf32>
    %424 = vector.shape_cast %423 : vector<1x16x32xf32> to vector<16x32xf32>
    %425 = vector.shape_cast %422 : vector<32xf32> to vector<1x32xf32>
    %426 = vector.broadcast %425 : vector<1x32xf32> to vector<16x32xf32>
    %427 = arith.mulf %426, %424 : vector<16x32xf32>
    %428 = arith.addf %396, %427 : vector<16x32xf32>
    %c41 = arith.constant 41 : index
    %c0_205 = arith.constant 0 : index
    %429 = vector.load %arg1[%c41, %c0_205] : memref<50x32xf32, #tpu.memory_space<vmem>>, vector<1x32xf32>
    %430 = vector.shape_cast %429 : vector<1x32xf32> to vector<32xf32>
    %c6_206 = arith.constant 6 : index
    %c5_207 = arith.constant 5 : index
    %c0_208 = arith.constant 0 : index
    %431 = vector.load %arg4[%c6_206, %c5_207, %c0_208] : memref<7x22x32xf32, #tpu.memory_space<vmem>>, vector<1x16x32xf32>
    %432 = vector.shape_cast %431 : vector<1x16x32xf32> to vector<16x32xf32>
    %433 = vector.shape_cast %430 : vector<32xf32> to vector<1x32xf32>
    %434 = vector.broadcast %433 : vector<1x32xf32> to vector<16x32xf32>
    %435 = arith.mulf %434, %432 : vector<16x32xf32>
    %436 = arith.addf %404, %435 : vector<16x32xf32>
    %c42 = arith.constant 42 : index
    %c0_209 = arith.constant 0 : index
    %437 = vector.load %arg1[%c42, %c0_209] : memref<50x32xf32, #tpu.memory_space<vmem>>, vector<1x32xf32>
    %438 = vector.shape_cast %437 : vector<1x32xf32> to vector<32xf32>
    %c0_210 = arith.constant 0 : index
    %c6_211 = arith.constant 6 : index
    %c0_212 = arith.constant 0 : index
    %439 = vector.load %arg4[%c0_210, %c6_211, %c0_212] : memref<7x22x32xf32, #tpu.memory_space<vmem>>, vector<1x16x32xf32>
    %440 = vector.shape_cast %439 : vector<1x16x32xf32> to vector<16x32xf32>
    %441 = vector.shape_cast %438 : vector<32xf32> to vector<1x32xf32>
    %442 = vector.broadcast %441 : vector<1x32xf32> to vector<16x32xf32>
    %443 = arith.mulf %442, %440 : vector<16x32xf32>
    %444 = arith.addf %412, %443 : vector<16x32xf32>
    %c43 = arith.constant 43 : index
    %c0_213 = arith.constant 0 : index
    %445 = vector.load %arg1[%c43, %c0_213] : memref<50x32xf32, #tpu.memory_space<vmem>>, vector<1x32xf32>
    %446 = vector.shape_cast %445 : vector<1x32xf32> to vector<32xf32>
    %c1_214 = arith.constant 1 : index
    %c6_215 = arith.constant 6 : index
    %c0_216 = arith.constant 0 : index
    %447 = vector.load %arg4[%c1_214, %c6_215, %c0_216] : memref<7x22x32xf32, #tpu.memory_space<vmem>>, vector<1x16x32xf32>
    %448 = vector.shape_cast %447 : vector<1x16x32xf32> to vector<16x32xf32>
    %449 = vector.shape_cast %446 : vector<32xf32> to vector<1x32xf32>
    %450 = vector.broadcast %449 : vector<1x32xf32> to vector<16x32xf32>
    %451 = arith.mulf %450, %448 : vector<16x32xf32>
    %452 = arith.addf %420, %451 : vector<16x32xf32>
    %c44 = arith.constant 44 : index
    %c0_217 = arith.constant 0 : index
    %453 = vector.load %arg1[%c44, %c0_217] : memref<50x32xf32, #tpu.memory_space<vmem>>, vector<1x32xf32>
    %454 = vector.shape_cast %453 : vector<1x32xf32> to vector<32xf32>
    %c2_218 = arith.constant 2 : index
    %c6_219 = arith.constant 6 : index
    %c0_220 = arith.constant 0 : index
    %455 = vector.load %arg4[%c2_218, %c6_219, %c0_220] : memref<7x22x32xf32, #tpu.memory_space<vmem>>, vector<1x16x32xf32>
    %456 = vector.shape_cast %455 : vector<1x16x32xf32> to vector<16x32xf32>
    %457 = vector.shape_cast %454 : vector<32xf32> to vector<1x32xf32>
    %458 = vector.broadcast %457 : vector<1x32xf32> to vector<16x32xf32>
    %459 = arith.mulf %458, %456 : vector<16x32xf32>
    %460 = arith.addf %428, %459 : vector<16x32xf32>
    %c45 = arith.constant 45 : index
    %c0_221 = arith.constant 0 : index
    %461 = vector.load %arg1[%c45, %c0_221] : memref<50x32xf32, #tpu.memory_space<vmem>>, vector<1x32xf32>
    %462 = vector.shape_cast %461 : vector<1x32xf32> to vector<32xf32>
    %c3_222 = arith.constant 3 : index
    %c6_223 = arith.constant 6 : index
    %c0_224 = arith.constant 0 : index
    %463 = vector.load %arg4[%c3_222, %c6_223, %c0_224] : memref<7x22x32xf32, #tpu.memory_space<vmem>>, vector<1x16x32xf32>
    %464 = vector.shape_cast %463 : vector<1x16x32xf32> to vector<16x32xf32>
    %465 = vector.shape_cast %462 : vector<32xf32> to vector<1x32xf32>
    %466 = vector.broadcast %465 : vector<1x32xf32> to vector<16x32xf32>
    %467 = arith.mulf %466, %464 : vector<16x32xf32>
    %468 = arith.addf %436, %467 : vector<16x32xf32>
    %c46 = arith.constant 46 : index
    %c0_225 = arith.constant 0 : index
    %469 = vector.load %arg1[%c46, %c0_225] : memref<50x32xf32, #tpu.memory_space<vmem>>, vector<1x32xf32>
    %470 = vector.shape_cast %469 : vector<1x32xf32> to vector<32xf32>
    %c4_226 = arith.constant 4 : index
    %c6_227 = arith.constant 6 : index
    %c0_228 = arith.constant 0 : index
    %471 = vector.load %arg4[%c4_226, %c6_227, %c0_228] : memref<7x22x32xf32, #tpu.memory_space<vmem>>, vector<1x16x32xf32>
    %472 = vector.shape_cast %471 : vector<1x16x32xf32> to vector<16x32xf32>
    %473 = vector.shape_cast %470 : vector<32xf32> to vector<1x32xf32>
    %474 = vector.broadcast %473 : vector<1x32xf32> to vector<16x32xf32>
    %475 = arith.mulf %474, %472 : vector<16x32xf32>
    %476 = arith.addf %444, %475 : vector<16x32xf32>
    %c47 = arith.constant 47 : index
    %c0_229 = arith.constant 0 : index
    %477 = vector.load %arg1[%c47, %c0_229] : memref<50x32xf32, #tpu.memory_space<vmem>>, vector<1x32xf32>
    %478 = vector.shape_cast %477 : vector<1x32xf32> to vector<32xf32>
    %c5_230 = arith.constant 5 : index
    %c6_231 = arith.constant 6 : index
    %c0_232 = arith.constant 0 : index
    %479 = vector.load %arg4[%c5_230, %c6_231, %c0_232] : memref<7x22x32xf32, #tpu.memory_space<vmem>>, vector<1x16x32xf32>
    %480 = vector.shape_cast %479 : vector<1x16x32xf32> to vector<16x32xf32>
    %481 = vector.shape_cast %478 : vector<32xf32> to vector<1x32xf32>
    %482 = vector.broadcast %481 : vector<1x32xf32> to vector<16x32xf32>
    %483 = arith.mulf %482, %480 : vector<16x32xf32>
    %484 = arith.addf %452, %483 : vector<16x32xf32>
    %c48 = arith.constant 48 : index
    %c0_233 = arith.constant 0 : index
    %485 = vector.load %arg1[%c48, %c0_233] : memref<50x32xf32, #tpu.memory_space<vmem>>, vector<1x32xf32>
    %486 = vector.shape_cast %485 : vector<1x32xf32> to vector<32xf32>
    %c6_234 = arith.constant 6 : index
    %c6_235 = arith.constant 6 : index
    %c0_236 = arith.constant 0 : index
    %487 = vector.load %arg4[%c6_234, %c6_235, %c0_236] : memref<7x22x32xf32, #tpu.memory_space<vmem>>, vector<1x16x32xf32>
    %488 = vector.shape_cast %487 : vector<1x16x32xf32> to vector<16x32xf32>
    %489 = vector.shape_cast %486 : vector<32xf32> to vector<1x32xf32>
    %490 = vector.broadcast %489 : vector<1x32xf32> to vector<16x32xf32>
    %491 = arith.mulf %490, %488 : vector<16x32xf32>
    %492 = arith.addf %460, %491 : vector<16x32xf32>
    %493 = arith.addf %492, %468 : vector<16x32xf32>
    %494 = arith.addf %476, %484 : vector<16x32xf32>
    %495 = arith.addf %493, %494 : vector<16x32xf32>
    %496 = vector.extract_strided_slice %495 {offsets = [0, 0], sizes = [16, 16], strides = [1, 1]} : vector<16x32xf32> to vector<16x16xf32>
    %497 = vector.extract_strided_slice %495 {offsets = [0, 16], sizes = [16, 16], strides = [1, 1]} : vector<16x32xf32> to vector<16x16xf32>
    %498 = arith.addf %496, %497 : vector<16x16xf32>
    %c0_237 = arith.constant 0 : index
    %c0_238 = arith.constant 0 : index
    %c0_239 = arith.constant 0 : index
    %c0_240 = arith.constant 0 : index
    %499 = vector.load %arg3[%c0_237, %c0_238, %c0_239, %c0_240] : memref<1x1x16x16xf32, #tpu.memory_space<vmem>>, vector<1x1x16x16xf32>
    %500 = vector.shape_cast %499 : vector<1x1x16x16xf32> to vector<16x16xf32>
    %501 = vector.shape_cast %498 : vector<16x16xf32> to vector<1x1x16x16xf32>
    tpu.vector_store %arg3[%c0_237, %c0_238, %c0_239, %c0_240], %501 {strides = array<i32>} : memref<1x1x16x16xf32, #tpu.memory_space<vmem>>, vector<1x1x16x16xf32>,
    return
  }
  func.func @transform_0(%arg0: i32) -> (i32, i32) {
    %c0_i32 = arith.constant 0 : i32
    %c0_i32_0 = arith.constant 0 : i32
    %c0_i32_1 = arith.constant 0 : i32
    return %c0_i32, %c0_i32_0 : i32, i32
  }
  func.func @transform_1(%arg0: i32) -> (i32, i32, i32, i32) {
    %c0_i32 = arith.constant 0 : i32
    %c0_i32_0 = arith.constant 0 : i32
    %c0_i32_1 = arith.constant 0 : i32
    %c0_i32_2 = arith.constant 0 : i32
    return %arg0, %c0_i32, %c0_i32_0, %c0_i32_1 : i32, i32, i32, i32
  }
  func.func @transform_2(%arg0: i32) -> (i32, i32, i32, i32) {
    %c0_i32 = arith.constant 0 : i32
    %c0_i32_0 = arith.constant 0 : i32
    %c0_i32_1 = arith.constant 0 : i32
    %c0_i32_2 = arith.constant 0 : i32
    return %arg0, %c0_i32, %c0_i32_0, %c0_i32_1 : i32, i32, i32, i32
  }
}

</mosaic_0001>

<llo_original>
// kernel: tpu_custom_call.1
$region0: #{tpu_custom_call.1}
  #allocation0 [shape = 'u32[]', space=smem, size = 0x4, offset = 0x4, fixed_abs, tag = 'smem constant byte address 0x4 - core index']
  #allocation1 [shape = 'u32[144,128]{1,0:T(1,128)}', space=vmem, size = 0x12000, scoped, tag = 'internal scratch']
  #allocation2 [shape = 'f32[7,22,32]{2,1,0:T(8,128)}', space=vmem, size = 0x15000, scoped, tag = 'scratch operand']
  %s0 = inlined_call_operand.vmem [shape: f32[50,32], index: 0, kind: input, shape index: {}]
  %s1 = inlined_call_operand.hbm [shape: f32[2,4,16,16], index: 1, kind: input, shape index: {}]
  %s2 = inlined_call_operand.hbm [shape: f32[2,1,16,16], index: 2, kind: output, shape index: {}]
  %s3 = sld [smem:[#allocation0]]
  $region45: #{tpu_custom_call.1} parent=0
    _
  %s5 = ssub.s32 1, %s3
  %s6 = scalar_select 0, %s5, %s3
  $region1: #{tpu_custom_call.1} parent=0
    #allocation3 [shape = 'u8[65536]{0}', space=vmem, size = 0x10000, scoped, tag = 'input window, operand 1']
    #allocation4 [shape = 's32[2]{0}', space=sflag, size = 0x8, scoped, tag = 'scoped memory for tpu_custom_call.1']
    #allocation5 [shape = 's32[2]{0}', space=sflag, size = 0x8, scoped, tag = 'scoped memory for tpu_custom_call.1']
    #allocation6 [shape = 'u8[16384]{0}', space=vmem, size = 0x4000, scoped, tag = 'output window, operand 0']
    %7 = vsyncpa [#allocation4], 0
    %s8 = scalar_lea.sflag [#allocation4], 1
    %9 = vsyncpa %s8, 0
    %10 = vsyncpa [#allocation5], 0
    %s11 = scalar_lea.sflag [#allocation5], 1
    %12 = vsyncpa %s11, 0
    loop: start=0, step=1, limit=4
    $region2: #{tpu_custom_call.1} parent=1 // loop_pre_header
      _
    $region3: #{tpu_custom_call.1} parent=1 // loop_header
      %s14 = sphi 0, %s18
      %p15 = scmp.ge.s32.totalorder %s14, 4
      %s22 = sphi 0, %s22
      %s24 = sphi 0, %s22
      %s25 = sphi 0, %s24
      %s39 = sphi 0, %s25
      %s45 = sphi 0, %s47
      %s48 = sphi 0, %s45
      %s49 = sphi 0, %s48
      %s65 = sphi 0, %s49
      %s71 = sphi 0, %s73
      %s74 = sphi 0, %s71
      %s75 = sphi 0, %s74
      %s91 = sphi 0, %s75
    $region4: #{tpu_custom_call.1} parent=1 // loop_header_branch
      %17 = sbr.rel (%p15) target = $region8
    $region5: #{tpu_custom_call.1} parent=1 // loop_body
      %s19 = ssub.s32 %s14, 1
      %s20 = ssub.s32 %s14, 2
      %s21 = sadd.s32 %s14, 1
      %s23 = sadd.s32 %s22, 1
      %p26 = scmp.eq.s32.totalorder %s14, 1
      %p27 = scmp.ne.s32.totalorder %s22, %s24
      %p28 = scmp.eq.s32.totalorder %s14, 0
      %p29 = por %p27, %p28
      %p30 = scmp.ne.s32.totalorder %s22, %s24
      %p31 = scmp.eq.s32.totalorder %s19, 1
      %p32 = por %p30, %p31
      %p33 = scmp.ne.s32.totalorder %s24, %s25
      %p34 = scmp.eq.s32.totalorder %s19, 0
      %p35 = por %p33, %p34
      %p36 = scmp.ne.s32.totalorder %s24, %s25
      %p37 = scmp.eq.s32.totalorder %s20, 1
      %p38 = por %p36, %p37
      %p40 = scmp.ne.s32.totalorder %s25, %s39
      %p41 = scmp.eq.s32.totalorder %s20, 0
      %p42 = por %p40, %p41
      %s43 = ssub.s32 %s14, %s21
      %p44 = scmp.eq.s32.totalorder %s43, 0
      %s46 = sadd.s32 %s45, 1
      %s47 = scalar_select %p44, %s45, %s46
      %p50 = pneg %p44
      %p51 = scmp.eq.s32.totalorder %s14, 1
      %p52 = por %p50, %p51
      %p53 = scmp.ne.s32.totalorder %s45, %s48
      %p54 = scmp.eq.s32.totalorder %s14, 0
      %p55 = por %p53, %p54
      %p56 = scmp.ne.s32.totalorder %s45, %s48
      %p57 = scmp.eq.s32.totalorder %s19, 1
      %p58 = por %p56, %p57
      %p59 = scmp.ne.s32.totalorder %s48, %s49
      %p60 = scmp.eq.s32.totalorder %s19, 0
      %p61 = por %p59, %p60
      %p62 = scmp.ne.s32.totalorder %s48, %s49
      %p63 = scmp.eq.s32.totalorder %s20, 1
      %p64 = por %p62, %p63
      %p66 = scmp.ne.s32.totalorder %s49, %s65
      %p67 = scmp.eq.s32.totalorder %s20, 0
      %p68 = por %p66, %p67
      %s69 = ssub.s32 %s14, %s21
      %p70 = scmp.eq.s32.totalorder %s69, 0
      %s72 = sadd.s32 %s71, 1
      %s73 = scalar_select %p70, %s71, %s72
      %p76 = pneg %p70
      %p77 = scmp.eq.s32.totalorder %s14, 1
      %p78 = por %p76, %p77
      %p79 = scmp.ne.s32.totalorder %s71, %s74
      %p80 = scmp.eq.s32.totalorder %s14, 0
      %p81 = por %p79, %p80
      %p82 = scmp.ne.s32.totalorder %s71, %s74
      %p83 = scmp.eq.s32.totalorder %s19, 1
      %p84 = por %p82, %p83
      %p85 = scmp.ne.s32.totalorder %s74, %s75
      %p86 = scmp.eq.s32.totalorder %s19, 0
      %p87 = por %p85, %p86
      %p88 = scmp.ne.s32.totalorder %s74, %s75
      %p89 = scmp.eq.s32.totalorder %s20, 1
      %p90 = por %p88, %p89
      %p92 = scmp.ne.s32.totalorder %s75, %s91
      %p93 = scmp.eq.s32.totalorder %s20, 0
      %p94 = por %p92, %p93
      %p95 = scmp.le.s32.totalorder 1, %s14
      %p96 = scmp.lt.s32.totalorder %s14, 3
      %p97 = pnand %p95, %p96
      %p98 = pneg %p97
      // Predicated region
      $region9: #{tpu_custom_call.1} parent=5 // pred_check
        _
      $region10: #{tpu_custom_call.1} parent=5 // pred_check_branch
        %100 = sbr.rel (%p97) target = $region12
      $region11: #{tpu_custom_call.1} parent=5 // pred_region
        %s101 = ssub.s32 %s14, 1
        // Predicated region
        $region13: #{tpu_custom_call.1} parent=11 // pred_check
          %p102 = pneg %p35
        $region14: #{tpu_custom_call.1} parent=11 // pred_check_branch
          %104 = sbr.rel (%p102) target = $region16
        $region15: #{tpu_custom_call.1} parent=11 // pred_region
          _
        $region16: #{tpu_custom_call.1} parent=11 // pred_fallthru
          _
      $region12: #{tpu_custom_call.1} parent=5 // pred_fallthru
        _
      %p105 = scmp.lt.s32.totalorder %s14, 2
      // Predicated region
      $region17: #{tpu_custom_call.1} parent=5 // pred_check
        %p106 = pneg %p105
      $region18: #{tpu_custom_call.1} parent=5 // pred_check_branch
        %108 = sbr.rel (%p106) target = $region20
      $region19: #{tpu_custom_call.1} parent=5 // pred_region
        // Predicated region
        $region21: #{tpu_custom_call.1} parent=19 // pred_check
          %p109 = pneg %p55
        $region22: #{tpu_custom_call.1} parent=19 // pred_check_branch
          %111 = sbr.rel (%p109) target = $region24
        $region23: #{tpu_custom_call.1} parent=19 // pred_region
          %s112 = sand.u32 %s45, 1
          %s113 = scalar_lea.sflag [#allocation4], %s112
          %s114 = sand.u32 %s45, 1
          %s115 = smul.addr %s114, 64
          %s116 = scalar_lea.vmem [#allocation3], %s115
          %s118 = ssub.s32 1024, 1024
          %119 = vsyncadd %s113, %s118
          %s120 = smul.addr %s14, 8
          %s121 = smul.addr %s120, 128
          %s122 = scalar_lea.hbm %s1, %s121
          %s123 = sshll.u32 %s116, 4
          %s124 = int_to_ptr.vmem [resolvable:$true] %s123
          %129 = dma.hbm_to_vmem [thread:$0]  %s122, 1024, %s124, %s113, 128, 128, 8
        $region24: #{tpu_custom_call.1} parent=19 // pred_fallthru
          _
      $region20: #{tpu_custom_call.1} parent=5 // pred_fallthru
        _
      %p130 = scmp.le.s32.totalorder 1, %s14
      %p131 = scmp.lt.s32.totalorder %s14, 3
      %p132 = pnand %p130, %p131
      %p133 = pneg %p132
      // Predicated region
      $region25: #{tpu_custom_call.1} parent=5 // pred_check
        _
      $region26: #{tpu_custom_call.1} parent=5 // pred_check_branch
        %135 = sbr.rel (%p132) target = $region28
      $region27: #{tpu_custom_call.1} parent=5 // pred_region
        %s136 = ssub.s32 %s14, 1
        %s137 = sand.u32 %s48, 1
        %s138 = scalar_lea.sflag [#allocation4], %s137
        %s139 = sand.u32 %s48, 1
        %s140 = smul.addr %s139, 64
        %s141 = scalar_lea.vmem [#allocation3], %s140
        // Predicated region
        $region29: #{tpu_custom_call.1} parent=27 // pred_check
          %p142 = pneg %p61
        $region30: #{tpu_custom_call.1} parent=27 // pred_check_branch
          %144 = sbr.rel (%p142) target = $region32
        $region31: #{tpu_custom_call.1} parent=27 // pred_region
          %145 = dma.done %s138, 1024
        $region32: #{tpu_custom_call.1} parent=27 // pred_fallthru
          _
        %p146 = pneg %p35
        %p147 = pneg %p32
        %s148 = sand.u32 %s48, 1
        %s149 = scalar_lea.sflag [#allocation4], %s148
        %s150 = sand.u32 %s48, 1
        %s151 = smul.addr %s150, 64
        %s152 = scalar_lea.vmem [#allocation3], %s151
        %p153 = pneg %p61
        %p154 = pneg %p58
        %p155 = pneg %p87
        %p156 = pneg %p84
        %s157 = sand.u32 %s74, 1
        %s158 = scalar_lea.sflag [#allocation5], %s157
        %s159 = sand.u32 %s74, 1
        %s160 = smul.addr %s159, 16
        %s161 = scalar_lea.vmem [#allocation6], %s160
        %v162 = vld [vmem:[%s141] sm:$0xff]
        %v163 = vld [vmem:[%s141 + $0x8] sm:$0xff]
        %s164 = scalar_lea.vmem %s141, 16 [#allocation3]
        %v165 = vld [vmem:[%s164] sm:$0xff]
        %v166 = vld [vmem:[%s164 + $0x8] sm:$0xff]
        %s167 = scalar_lea.vmem %s141, 32 [#allocation3]
        %v168 = vld [vmem:[%s167] sm:$0xff]
        %v169 = vld [vmem:[%s167 + $0x8] sm:$0xff]
        %v170 = vadd.f32 %v162, %v168
        %v171 = vadd.f32 %v163, %v169
        %v172 = vmax.f32 %v162, %v168
        %v173 = vmax.f32 %v163, %v169
        %s174 = scalar_lea.vmem %s141, 48 [#allocation3]
        %v175 = vld [vmem:[%s174] sm:$0xff]
        %v176 = vld [vmem:[%s174 + $0x8] sm:$0xff]
        %v177 = vadd.f32 %v165, %v175
        %v178 = vadd.f32 %v166, %v176
        %v179 = vmax.f32 %v165, %v175
        %v180 = vmax.f32 %v166, %v176
        %v181 = vadd.f32 %v170, %v177
        %v182 = vadd.f32 %v171, %v178
        %v183 = vmul.f32 %v181, 0.25
        %v184 = vmul.f32 %v182, 0.25
        %v185 = vmax.f32 %v172, %v179
        %v186 = vmax.f32 %v173, %v180
        %v188 = vrot.slane %v183, 3
        %v190 = vrot.slane %v183, 1
        %v192 = vrot.slane %v183, 7
        %vm194 = vcmask 1040384
        %v195 = vsel %vm194, %v188, %v190
        %vm196 = vcmask 1041408
        %v197 = vsel %vm196, %v195, %v192
        %v199 = vrot.slane %v184, 6
        %v201 = vrot.slane %v184, 4
        %v203 = vrot.slane %v184, 2
        %v205 = vsel %vm194, %v199, %v201
        %v206 = vsel %vm196, %v205, %v203
        %vm207 = vcmask 1042432
        %v208 = vrot.slane %v183, 5
        %v209 = vrot.slane %v184, 5
        %v210 = vsel %vm207, %v208, %v209
        %v214 = vrot.slane %v206, 5
        %v216 = vsel %vm207, %v197, %v208
        %v217 = vsel %vm207, %v209, %v214
        %220 = vrot.lane.b32.xlu0 %v216, 125
        %v221 = vpop.permute.xlu0 %220
        %222 = vrot.lane.b32.xlu0 %v210, 125
        %v223 = vpop.permute.xlu0 %222
        %224 = vrot.lane.b32.xlu0 %v217, 125
        %v225 = vpop.permute.xlu0 %224
        %229 = vrot.lane.b32.xlu0 %v216, 127
        %v230 = vpop.permute.xlu0 %229
        %231 = vrot.lane.b32.xlu0 %v210, 127
        %v232 = vpop.permute.xlu0 %231
        %233 = vrot.lane.b32.xlu0 %v217, 127
        %v234 = vpop.permute.xlu0 %233
        %238 = vrot.lane.b32.xlu0 %v216, 1
        %v239 = vpop.permute.xlu0 %238
        %240 = vrot.lane.b32.xlu0 %v210, 1
        %v241 = vpop.permute.xlu0 %240
        %242 = vrot.lane.b32.xlu0 %v217, 1
        %v243 = vpop.permute.xlu0 %242
        %vm247 = vcmask 7168
        %v248 = vsel %vm247, %v221, %v230
        %v249 = vsel %vm247, %v223, %v232
        %v250 = vsel %vm247, %v225, %v234
        %vm251 = vcmask 15360
        %v252 = vsel %vm251, %v248, %v239
        %v253 = vsel %vm251, %v249, %v241
        %v254 = vsel %vm251, %v250, %v243
        %255 = vrot.lane.b32.xlu0 %v216, 114
        %v256 = vpop.permute.xlu0 %255
        %257 = vrot.lane.b32.xlu0 %v210, 114
        %v258 = vpop.permute.xlu0 %257
        %259 = vrot.lane.b32.xlu0 %v217, 114
        %v260 = vpop.permute.xlu0 %259
        %264 = vrot.lane.b32.xlu0 %v216, 116
        %v265 = vpop.permute.xlu0 %264
        %266 = vrot.lane.b32.xlu0 %v210, 116
        %v267 = vpop.permute.xlu0 %266
        %268 = vrot.lane.b32.xlu0 %v217, 116
        %v269 = vpop.permute.xlu0 %268
        %273 = vrot.lane.b32.xlu0 %v216, 118
        %v274 = vpop.permute.xlu0 %273
        %275 = vrot.lane.b32.xlu0 %v210, 118
        %v276 = vpop.permute.xlu0 %275
        %277 = vrot.lane.b32.xlu0 %v217, 118
        %v278 = vpop.permute.xlu0 %277
        %v282 = vsel %vm247, %v256, %v265
        %v283 = vsel %vm247, %v258, %v267
        %v284 = vsel %vm247, %v260, %v269
        %v285 = vsel %vm251, %v282, %v274
        %v286 = vsel %vm251, %v283, %v276
        %v287 = vsel %vm251, %v284, %v278
        %288 = vrot.lane.b32.xlu0 %v216, 3
        %v289 = vpop.permute.xlu0 %288
        %290 = vrot.lane.b32.xlu0 %v210, 3
        %v291 = vpop.permute.xlu0 %290
        %292 = vrot.lane.b32.xlu0 %v217, 3
        %v293 = vpop.permute.xlu0 %292
        %300 = vrot.lane.b32.xlu0 %v285, 19
        %v301 = vpop.permute.xlu0 %300
        %302 = vrot.lane.b32.xlu0 %v286, 19
        %v303 = vpop.permute.xlu0 %302
        %304 = vrot.lane.b32.xlu0 %v287, 19
        %v305 = vpop.permute.xlu0 %304
        %vm309 = vcmask 23552
        %v310 = vsel %vm309, %v252, %v289
        %v311 = vsel %vm309, %v253, %v291
        %v312 = vsel %vm309, %v254, %v293
        %vm313 = vcmask 154624
        %v314 = vsel %vm313, %v310, %v301
        %v315 = vsel %vm313, %v311, %v303
        %v316 = vsel %vm313, %v312, %v305
        %v318 = vrot.slane %v185, 3
        %v320 = vrot.slane %v185, 1
        %v322 = vrot.slane %v185, 7
        %v324 = vsel %vm194, %v318, %v320
        %v325 = vsel %vm196, %v324, %v322
        %v327 = vrot.slane %v186, 6
        %v329 = vrot.slane %v186, 4
        %v331 = vrot.slane %v186, 2
        %v333 = vsel %vm194, %v327, %v329
        %v334 = vsel %vm196, %v333, %v331
        %v335 = vrot.slane %v185, 5
        %v336 = vrot.slane %v186, 5
        %v337 = vsel %vm207, %v335, %v336
        %v341 = vrot.slane %v334, 5
        %v343 = vsel %vm207, %v325, %v335
        %v344 = vsel %vm207, %v336, %v341
        %347 = vrot.lane.b32.xlu0 %v343, 125
        %v348 = vpop.permute.xlu0 %347
        %349 = vrot.lane.b32.xlu0 %v337, 125
        %v350 = vpop.permute.xlu0 %349
        %351 = vrot.lane.b32.xlu0 %v344, 125
        %v352 = vpop.permute.xlu0 %351
        %356 = vrot.lane.b32.xlu0 %v343, 127
        %v357 = vpop.permute.xlu0 %356
        %358 = vrot.lane.b32.xlu0 %v337, 127
        %v359 = vpop.permute.xlu0 %358
        %360 = vrot.lane.b32.xlu0 %v344, 127
        %v361 = vpop.permute.xlu0 %360
        %365 = vrot.lane.b32.xlu0 %v343, 1
        %v366 = vpop.permute.xlu0 %365
        %367 = vrot.lane.b32.xlu0 %v337, 1
        %v368 = vpop.permute.xlu0 %367
        %369 = vrot.lane.b32.xlu0 %v344, 1
        %v370 = vpop.permute.xlu0 %369
        %v374 = vsel %vm247, %v348, %v357
        %v375 = vsel %vm247, %v350, %v359
        %v376 = vsel %vm247, %v352, %v361
        %v377 = vsel %vm251, %v374, %v366
        %v378 = vsel %vm251, %v375, %v368
        %v379 = vsel %vm251, %v376, %v370
        %380 = vrot.lane.b32.xlu0 %v343, 114
        %v381 = vpop.permute.xlu0 %380
        %382 = vrot.lane.b32.xlu0 %v337, 114
        %v383 = vpop.permute.xlu0 %382
        %384 = vrot.lane.b32.xlu0 %v344, 114
        %v385 = vpop.permute.xlu0 %384
        %389 = vrot.lane.b32.xlu0 %v343, 116
        %v390 = vpop.permute.xlu0 %389
        %391 = vrot.lane.b32.xlu0 %v337, 116
        %v392 = vpop.permute.xlu0 %391
        %393 = vrot.lane.b32.xlu0 %v344, 116
        %v394 = vpop.permute.xlu0 %393
        %398 = vrot.lane.b32.xlu0 %v343, 118
        %v399 = vpop.permute.xlu0 %398
        %400 = vrot.lane.b32.xlu0 %v337, 118
        %v401 = vpop.permute.xlu0 %400
        %402 = vrot.lane.b32.xlu0 %v344, 118
        %v403 = vpop.permute.xlu0 %402
        %v407 = vsel %vm247, %v381, %v390
        %v408 = vsel %vm247, %v383, %v392
        %v409 = vsel %vm247, %v385, %v394
        %v410 = vsel %vm251, %v407, %v399
        %v411 = vsel %vm251, %v408, %v401
        %v412 = vsel %vm251, %v409, %v403
        %413 = vrot.lane.b32.xlu0 %v343, 3
        %v414 = vpop.permute.xlu0 %413
        %415 = vrot.lane.b32.xlu0 %v337, 3
        %v416 = vpop.permute.xlu0 %415
        %417 = vrot.lane.b32.xlu0 %v344, 3
        %v418 = vpop.permute.xlu0 %417
        %425 = vrot.lane.b32.xlu0 %v410, 19
        %v426 = vpop.permute.xlu0 %425
        %427 = vrot.lane.b32.xlu0 %v411, 19
        %v428 = vpop.permute.xlu0 %427
        %429 = vrot.lane.b32.xlu0 %v412, 19
        %v430 = vpop.permute.xlu0 %429
        %v434 = vsel %vm309, %v377, %v414
        %v435 = vsel %vm309, %v378, %v416
        %v436 = vsel %vm309, %v379, %v418
        %v437 = vsel %vm313, %v434, %v426
        %v438 = vsel %vm313, %v435, %v428
        %v439 = vsel %vm313, %v436, %v430
        %443 = vrot.lane.b32.xlu0 %v437, 16
        %v444 = vpop.permute.xlu0 %443
        %445 = vrot.lane.b32.xlu0 %v438, 16
        %v446 = vpop.permute.xlu0 %445
        %447 = vrot.lane.b32.xlu0 %v439, 16
        %v448 = vpop.permute.xlu0 %447
        %vm452 = vcmask 130048
        %v453 = vsel %vm452, %v314, %v444
        %v454 = vsel %vm452, %v315, %v446
        %v455 = vsel %vm452, %v316, %v448
        %vm456 = vcmask 261120
        %457 = vst.msk [vmem:[#allocation2] sm:$0xff] %vm456, %v453
        %458 = vst.msk [vmem:[#allocation2 + $0x8] sm:$0xff] %vm456, %v454
        %vm459 = vcmask 259072
        %460 = vst.msk [vmem:[#allocation2 + $0x10] sm:$0x3f] %vm459, %v455
        %464 = vrot.lane.b32.xlu0 %v314, 127
        %v465 = vpop.permute.xlu0 %464
        %466 = vrot.lane.b32.xlu0 %v315, 127
        %v467 = vpop.permute.xlu0 %466
        %468 = vrot.lane.b32.xlu0 %v316, 127
        %v469 = vpop.permute.xlu0 %468
        %473 = vrot.lane.b32.xlu0 %v437, 15
        %v474 = vpop.permute.xlu0 %473
        %475 = vrot.lane.b32.xlu0 %v438, 15
        %v476 = vpop.permute.xlu0 %475
        %477 = vrot.lane.b32.xlu0 %v439, 15
        %v478 = vpop.permute.xlu0 %477
        %v482 = vsel %vm452, %v465, %v474
        %v483 = vsel %vm452, %v467, %v476
        %v484 = vsel %vm452, %v469, %v478
        %s485 = scalar_lea.vmem [#allocation2], 24
        %486 = vst.msk [vmem:[%s485] sm:$0xff] %vm456, %v482
        %487 = vst.msk [vmem:[%s485 + $0x8] sm:$0xff] %vm456, %v483
        %488 = vst.msk [vmem:[%s485 + $0x10] sm:$0x3f] %vm459, %v484
        %489 = vrot.lane.b32.xlu0 %v314, 126
        %v490 = vpop.permute.xlu0 %489
        %491 = vrot.lane.b32.xlu0 %v315, 126
        %v492 = vpop.permute.xlu0 %491
        %493 = vrot.lane.b32.xlu0 %v316, 126
        %v494 = vpop.permute.xlu0 %493
        %498 = vrot.lane.b32.xlu0 %v437, 14
        %v499 = vpop.permute.xlu0 %498
        %500 = vrot.lane.b32.xlu0 %v438, 14
        %v501 = vpop.permute.xlu0 %500
        %502 = vrot.lane.b32.xlu0 %v439, 14
        %v503 = vpop.permute.xlu0 %502
        %v507 = vsel %vm452, %v490, %v499
        %v508 = vsel %vm452, %v492, %v501
        %v509 = vsel %vm452, %v494, %v503
        %s510 = scalar_lea.vmem [#allocation2], 48
        %511 = vst.msk [vmem:[%s510] sm:$0xff] %vm456, %v507
        %512 = vst.msk [vmem:[%s510 + $0x8] sm:$0xff] %vm456, %v508
        %513 = vst.msk [vmem:[%s510 + $0x10] sm:$0x3f] %vm459, %v509
        %514 = vrot.lane.b32.xlu0 %v314, 125
        %v515 = vpop.permute.xlu0 %514
        %516 = vrot.lane.b32.xlu0 %v315, 125
        %v517 = vpop.permute.xlu0 %516
        %518 = vrot.lane.b32.xlu0 %v316, 125
        %v519 = vpop.permute.xlu0 %518
        %523 = vrot.lane.b32.xlu0 %v437, 13
        %v524 = vpop.permute.xlu0 %523
        %525 = vrot.lane.b32.xlu0 %v438, 13
        %v526 = vpop.permute.xlu0 %525
        %527 = vrot.lane.b32.xlu0 %v439, 13
        %v528 = vpop.permute.xlu0 %527
        %v532 = vsel %vm452, %v515, %v524
        %v533 = vsel %vm452, %v517, %v526
        %v534 = vsel %vm452, %v519, %v528
        %s535 = scalar_lea.vmem [#allocation2], 72
        %536 = vst.msk [vmem:[%s535] sm:$0xff] %vm456, %v532
        %537 = vst.msk [vmem:[%s535 + $0x8] sm:$0xff] %vm456, %v533
        %538 = vst.msk [vmem:[%s535 + $0x10] sm:$0x3f] %vm459, %v534
        %539 = vrot.lane.b32.xlu0 %v314, 124
        %v540 = vpop.permute.xlu0 %539
        %541 = vrot.lane.b32.xlu0 %v315, 124
        %v542 = vpop.permute.xlu0 %541
        %543 = vrot.lane.b32.xlu0 %v316, 124
        %v544 = vpop.permute.xlu0 %543
        %548 = vrot.lane.b32.xlu0 %v437, 12
        %v549 = vpop.permute.xlu0 %548
        %550 = vrot.lane.b32.xlu0 %v438, 12
        %v551 = vpop.permute.xlu0 %550
        %552 = vrot.lane.b32.xlu0 %v439, 12
        %v553 = vpop.permute.xlu0 %552
        %v557 = vsel %vm452, %v540, %v549
        %v558 = vsel %vm452, %v542, %v551
        %v559 = vsel %vm452, %v544, %v553
        %s560 = scalar_lea.vmem [#allocation2], 96
        %561 = vst.msk [vmem:[%s560] sm:$0xff] %vm456, %v557
        %562 = vst.msk [vmem:[%s560 + $0x8] sm:$0xff] %vm456, %v558
        %563 = vst.msk [vmem:[%s560 + $0x10] sm:$0x3f] %vm459, %v559
        %564 = vrot.lane.b32.xlu0 %v314, 123
        %v565 = vpop.permute.xlu0 %564
        %566 = vrot.lane.b32.xlu0 %v315, 123
        %v567 = vpop.permute.xlu0 %566
        %568 = vrot.lane.b32.xlu0 %v316, 123
        %v569 = vpop.permute.xlu0 %568
        %573 = vrot.lane.b32.xlu0 %v437, 11
        %v574 = vpop.permute.xlu0 %573
        %575 = vrot.lane.b32.xlu0 %v438, 11
        %v576 = vpop.permute.xlu0 %575
        %577 = vrot.lane.b32.xlu0 %v439, 11
        %v578 = vpop.permute.xlu0 %577
        %v582 = vsel %vm452, %v565, %v574
        %v583 = vsel %vm452, %v567, %v576
        %v584 = vsel %vm452, %v569, %v578
        %s585 = scalar_lea.vmem [#allocation2], 120
        %586 = vst.msk [vmem:[%s585] sm:$0xff] %vm456, %v582
        %587 = vst.msk [vmem:[%s585 + $0x8] sm:$0xff] %vm456, %v583
        %588 = vst.msk [vmem:[%s585 + $0x10] sm:$0x3f] %vm459, %v584
        %589 = vrot.lane.b32.xlu0 %v314, 122
        %v590 = vpop.permute.xlu0 %589
        %591 = vrot.lane.b32.xlu0 %v315, 122
        %v592 = vpop.permute.xlu0 %591
        %593 = vrot.lane.b32.xlu0 %v316, 122
        %v594 = vpop.permute.xlu0 %593
        %598 = vrot.lane.b32.xlu0 %v437, 10
        %v599 = vpop.permute.xlu0 %598
        %600 = vrot.lane.b32.xlu0 %v438, 10
        %v601 = vpop.permute.xlu0 %600
        %602 = vrot.lane.b32.xlu0 %v439, 10
        %v603 = vpop.permute.xlu0 %602
        %v607 = vsel %vm452, %v590, %v599
        %v608 = vsel %vm452, %v592, %v601
        %v609 = vsel %vm452, %v594, %v603
        %s610 = scalar_lea.vmem [#allocation2], 144
        %611 = vst.msk [vmem:[%s610] sm:$0xff] %vm456, %v607
        %612 = vst.msk [vmem:[%s610 + $0x8] sm:$0xff] %vm456, %v608
        %613 = vst.msk [vmem:[%s610 + $0x10] sm:$0x3f] %vm459, %v609
        %v614 = vld [vmem:[%s0 + $0x31] sm:$0x1]
        %v615 = vlaneseq
        %v616 = vshrl.u32 %v615, 7
        %v617 = vsub.s32 0, %v616
        %v618 = vrot.slane %v614, %v617
        %v619 = vld [vmem:[%s0] sm:$0x1]
        %v620 = vld [vmem:[#allocation2] sm:$0xff]
        %v621 = vld [vmem:[#allocation2 + $0x8] sm:$0xff]
        %v622 = vlaneseq
        %v623 = vshrl.u32 %v622, 7
        %v624 = vsub.s32 0, %v623
        %v625 = vrot.slane %v619, %v624
        %v626 = vmul.f32 %v625, %v620
        %v627 = vmul.f32 %v625, %v621
        %v628 = vadd.f32 %v618, %v626
        %v629 = vadd.f32 %v618, %v627
        %v630 = vld [vmem:[%s0 + $0x1] sm:$0x1]
        %v631 = vld [vmem:[%s485] sm:$0xff]
        %v632 = vld [vmem:[%s485 + $0x8] sm:$0xff]
        %v633 = vlaneseq
        %v634 = vshrl.u32 %v633, 7
        %v635 = vsub.s32 0, %v634
        %v636 = vrot.slane %v630, %v635
        %v637 = vmul.f32 %v636, %v631
        %v638 = vmul.f32 %v636, %v632
        %v639 = vadd.f32 %v637, 0.0
        %v640 = vadd.f32 %v638, 0.0
        %v641 = vld [vmem:[%s0 + $0x2] sm:$0x1]
        %v642 = vld [vmem:[%s510] sm:$0xff]
        %v643 = vld [vmem:[%s510 + $0x8] sm:$0xff]
        %v644 = vlaneseq
        %v645 = vshrl.u32 %v644, 7
        %v646 = vsub.s32 0, %v645
        %v647 = vrot.slane %v641, %v646
        %v648 = vmul.f32 %v647, %v642
        %v649 = vmul.f32 %v647, %v643
        %v650 = vadd.f32 %v648, 0.0
        %v651 = vadd.f32 %v649, 0.0
        %v652 = vld [vmem:[%s0 + $0x3] sm:$0x1]
        %v653 = vld [vmem:[%s535] sm:$0xff]
        %v654 = vld [vmem:[%s535 + $0x8] sm:$0xff]
        %v655 = vlaneseq
        %v656 = vshrl.u32 %v655, 7
        %v657 = vsub.s32 0, %v656
        %v658 = vrot.slane %v652, %v657
        %v659 = vmul.f32 %v658, %v653
        %v660 = vmul.f32 %v658, %v654
        %v661 = vadd.f32 %v659, 0.0
        %v662 = vadd.f32 %v660, 0.0
        %v663 = vld [vmem:[%s0 + $0x4] sm:$0x1]
        %v664 = vld [vmem:[%s560] sm:$0xff]
        %v665 = vld [vmem:[%s560 + $0x8] sm:$0xff]
        %v666 = vlaneseq
        %v667 = vshrl.u32 %v666, 7
        %v668 = vsub.s32 0, %v667
        %v669 = vrot.slane %v663, %v668
        %v670 = vmul.f32 %v669, %v664
        %v671 = vmul.f32 %v669, %v665
        %v672 = vadd.f32 %v628, %v670
        %v673 = vadd.f32 %v629, %v671
        %v674 = vld [vmem:[%s0 + $0x5] sm:$0x1]
        %v675 = vld [vmem:[%s585] sm:$0xff]
        %v676 = vld [vmem:[%s585 + $0x8] sm:$0xff]
        %v677 = vlaneseq
        %v678 = vshrl.u32 %v677, 7
        %v679 = vsub.s32 0, %v678
        %v680 = vrot.slane %v674, %v679
        %v681 = vmul.f32 %v680, %v675
        %v682 = vmul.f32 %v680, %v676
        %v683 = vadd.f32 %v639, %v681
        %v684 = vadd.f32 %v640, %v682
        %v685 = vld [vmem:[%s0 + $0x6] sm:$0x1]
        %v686 = vld [vmem:[%s610] sm:$0xff]
        %v687 = vld [vmem:[%s610 + $0x8] sm:$0xff]
        %v688 = vlaneseq
        %v689 = vshrl.u32 %v688, 7
        %v690 = vsub.s32 0, %v689
        %v691 = vrot.slane %v685, %v690
        %v692 = vmul.f32 %v691, %v686
        %v693 = vmul.f32 %v691, %v687
        %v694 = vadd.f32 %v650, %v692
        %v695 = vadd.f32 %v651, %v693
        %v696 = vld [vmem:[%s0 + $0x7] sm:$0x1]
        %v697 = vld [vmem:[#allocation2 + $0x1] sm:$0xff]
        %v698 = vld [vmem:[#allocation2 + $0x9] sm:$0xff]
        %v699 = vlaneseq
        %v700 = vshrl.u32 %v699, 7
        %v701 = vsub.s32 0, %v700
        %v702 = vrot.slane %v696, %v701
        %v703 = vmul.f32 %v702, %v697
        %v704 = vmul.f32 %v702, %v698
        %v705 = vadd.f32 %v661, %v703
        %v706 = vadd.f32 %v662, %v704
        %v707 = vld [vmem:[%s0 + $0x8] sm:$0x1]
        %v708 = vld [vmem:[%s485 + $0x1] sm:$0xff]
        %v709 = vld [vmem:[%s485 + $0x9] sm:$0xff]
        %v710 = vlaneseq
        %v711 = vshrl.u32 %v710, 7
        %v712 = vsub.s32 0, %v711
        %v713 = vrot.slane %v707, %v712
        %v714 = vmul.f32 %v713, %v708
        %v715 = vmul.f32 %v713, %v709
        %v716 = vadd.f32 %v672, %v714
        %v717 = vadd.f32 %v673, %v715
        %v718 = vld [vmem:[%s0 + $0x9] sm:$0x1]
        %v719 = vld [vmem:[%s510 + $0x1] sm:$0xff]
        %v720 = vld [vmem:[%s510 + $0x9] sm:$0xff]
        %v721 = vlaneseq
        %v722 = vshrl.u32 %v721, 7
        %v723 = vsub.s32 0, %v722
        %v724 = vrot.slane %v718, %v723
        %v725 = vmul.f32 %v724, %v719
        %v726 = vmul.f32 %v724, %v720
        %v727 = vadd.f32 %v683, %v725
        %v728 = vadd.f32 %v684, %v726
        %v729 = vld [vmem:[%s0 + $0xa] sm:$0x1]
        %v730 = vld [vmem:[%s535 + $0x1] sm:$0xff]
        %v731 = vld [vmem:[%s535 + $0x9] sm:$0xff]
        %v732 = vlaneseq
        %v733 = vshrl.u32 %v732, 7
        %v734 = vsub.s32 0, %v733
        %v735 = vrot.slane %v729, %v734
        %v736 = vmul.f32 %v735, %v730
        %v737 = vmul.f32 %v735, %v731
        %v738 = vadd.f32 %v694, %v736
        %v739 = vadd.f32 %v695, %v737
        %v740 = vld [vmem:[%s0 + $0xb] sm:$0x1]
        %v741 = vld [vmem:[%s560 + $0x1] sm:$0xff]
        %v742 = vld [vmem:[%s560 + $0x9] sm:$0xff]
        %v743 = vlaneseq
        %v744 = vshrl.u32 %v743, 7
        %v745 = vsub.s32 0, %v744
        %v746 = vrot.slane %v740, %v745
        %v747 = vmul.f32 %v746, %v741
        %v748 = vmul.f32 %v746, %v742
        %v749 = vadd.f32 %v705, %v747
        %v750 = vadd.f32 %v706, %v748
        %v751 = vld [vmem:[%s0 + $0xc] sm:$0x1]
        %v752 = vld [vmem:[%s585 + $0x1] sm:$0xff]
        %v753 = vld [vmem:[%s585 + $0x9] sm:$0xff]
        %v754 = vlaneseq
        %v755 = vshrl.u32 %v754, 7
        %v756 = vsub.s32 0, %v755
        %v757 = vrot.slane %v751, %v756
        %v758 = vmul.f32 %v757, %v752
        %v759 = vmul.f32 %v757, %v753
        %v760 = vadd.f32 %v716, %v758
        %v761 = vadd.f32 %v717, %v759
        %v762 = vld [vmem:[%s0 + $0xd] sm:$0x1]
        %v763 = vld [vmem:[%s610 + $0x1] sm:$0xff]
        %v764 = vld [vmem:[%s610 + $0x9] sm:$0xff]
        %v765 = vlaneseq
        %v766 = vshrl.u32 %v765, 7
        %v767 = vsub.s32 0, %v766
        %v768 = vrot.slane %v762, %v767
        %v769 = vmul.f32 %v768, %v763
        %v770 = vmul.f32 %v768, %v764
        %v771 = vadd.f32 %v727, %v769
        %v772 = vadd.f32 %v728, %v770
        %v773 = vld [vmem:[%s0 + $0xe] sm:$0x1]
        %v774 = vld [vmem:[#allocation2 + $0x2] sm:$0xff]
        %v775 = vld [vmem:[#allocation2 + $0xa] sm:$0xff]
        %v776 = vlaneseq
        %v777 = vshrl.u32 %v776, 7
        %v778 = vsub.s32 0, %v777
        %v779 = vrot.slane %v773, %v778
        %v780 = vmul.f32 %v779, %v774
        %v781 = vmul.f32 %v779, %v775
        %v782 = vadd.f32 %v738, %v780
        %v783 = vadd.f32 %v739, %v781
        %v784 = vld [vmem:[%s0 + $0xf] sm:$0x1]
        %v785 = vld [vmem:[%s485 + $0x2] sm:$0xff]
        %v786 = vld [vmem:[%s485 + $0xa] sm:$0xff]
        %v787 = vlaneseq
        %v788 = vshrl.u32 %v787, 7
        %v789 = vsub.s32 0, %v788
        %v790 = vrot.slane %v784, %v789
        %v791 = vmul.f32 %v790, %v785
        %v792 = vmul.f32 %v790, %v786
        %v793 = vadd.f32 %v749, %v791
        %v794 = vadd.f32 %v750, %v792
        %v795 = vld [vmem:[%s0 + $0x10] sm:$0x1]
        %v796 = vld [vmem:[%s510 + $0x2] sm:$0xff]
        %v797 = vld [vmem:[%s510 + $0xa] sm:$0xff]
        %v798 = vlaneseq
        %v799 = vshrl.u32 %v798, 7
        %v800 = vsub.s32 0, %v799
        %v801 = vrot.slane %v795, %v800
        %v802 = vmul.f32 %v801, %v796
        %v803 = vmul.f32 %v801, %v797
        %v804 = vadd.f32 %v760, %v802
        %v805 = vadd.f32 %v761, %v803
        %v806 = vld [vmem:[%s0 + $0x11] sm:$0x1]
        %v807 = vld [vmem:[%s535 + $0x2] sm:$0xff]
        %v808 = vld [vmem:[%s535 + $0xa] sm:$0xff]
        %v809 = vlaneseq
        %v810 = vshrl.u32 %v809, 7
        %v811 = vsub.s32 0, %v810
        %v812 = vrot.slane %v806, %v811
        %v813 = vmul.f32 %v812, %v807
        %v814 = vmul.f32 %v812, %v808
        %v815 = vadd.f32 %v771, %v813
        %v816 = vadd.f32 %v772, %v814
        %v817 = vld [vmem:[%s0 + $0x12] sm:$0x1]
        %v818 = vld [vmem:[%s560 + $0x2] sm:$0xff]
        %v819 = vld [vmem:[%s560 + $0xa] sm:$0xff]
        %v820 = vlaneseq
        %v821 = vshrl.u32 %v820, 7
        %v822 = vsub.s32 0, %v821
        %v823 = vrot.slane %v817, %v822
        %v824 = vmul.f32 %v823, %v818
        %v825 = vmul.f32 %v823, %v819
        %v826 = vadd.f32 %v782, %v824
        %v827 = vadd.f32 %v783, %v825
        %v828 = vld [vmem:[%s0 + $0x13] sm:$0x1]
        %v829 = vld [vmem:[%s585 + $0x2] sm:$0xff]
        %v830 = vld [vmem:[%s585 + $0xa] sm:$0xff]
        %v831 = vlaneseq
        %v832 = vshrl.u32 %v831, 7
        %v833 = vsub.s32 0, %v832
        %v834 = vrot.slane %v828, %v833
        %v835 = vmul.f32 %v834, %v829
        %v836 = vmul.f32 %v834, %v830
        %v837 = vadd.f32 %v793, %v835
        %v838 = vadd.f32 %v794, %v836
        %v839 = vld [vmem:[%s0 + $0x14] sm:$0x1]
        %v840 = vld [vmem:[%s610 + $0x2] sm:$0xff]
        %v841 = vld [vmem:[%s610 + $0xa] sm:$0xff]
        %v842 = vlaneseq
        %v843 = vshrl.u32 %v842, 7
        %v844 = vsub.s32 0, %v843
        %v845 = vrot.slane %v839, %v844
        %v846 = vmul.f32 %v845, %v840
        %v847 = vmul.f32 %v845, %v841
        %v848 = vadd.f32 %v804, %v846
        %v849 = vadd.f32 %v805, %v847
        %v850 = vld [vmem:[%s0 + $0x15] sm:$0x1]
        %v851 = vld [vmem:[#allocation2 + $0x3] sm:$0xff]
        %v852 = vld [vmem:[#allocation2 + $0xb] sm:$0xff]
        %v853 = vlaneseq
        %v854 = vshrl.u32 %v853, 7
        %v855 = vsub.s32 0, %v854
        %v856 = vrot.slane %v850, %v855
        %v857 = vmul.f32 %v856, %v851
        %v858 = vmul.f32 %v856, %v852
        %v859 = vadd.f32 %v815, %v857
        %v860 = vadd.f32 %v816, %v858
        %v861 = vld [vmem:[%s0 + $0x16] sm:$0x1]
        %v862 = vld [vmem:[%s485 + $0x3] sm:$0xff]
        %v863 = vld [vmem:[%s485 + $0xb] sm:$0xff]
        %v864 = vlaneseq
        %v865 = vshrl.u32 %v864, 7
        %v866 = vsub.s32 0, %v865
        %v867 = vrot.slane %v861, %v866
        %v868 = vmul.f32 %v867, %v862
        %v869 = vmul.f32 %v867, %v863
        %v870 = vadd.f32 %v826, %v868
        %v871 = vadd.f32 %v827, %v869
        %v872 = vld [vmem:[%s0 + $0x17] sm:$0x1]
        %v873 = vld [vmem:[%s510 + $0x3] sm:$0xff]
        %v874 = vld [vmem:[%s510 + $0xb] sm:$0xff]
        %v875 = vlaneseq
        %v876 = vshrl.u32 %v875, 7
        %v877 = vsub.s32 0, %v876
        %v878 = vrot.slane %v872, %v877
        %v879 = vmul.f32 %v878, %v873
        %v880 = vmul.f32 %v878, %v874
        %v881 = vadd.f32 %v837, %v879
        %v882 = vadd.f32 %v838, %v880
        %v883 = vld [vmem:[%s0 + $0x18] sm:$0x1]
        %v884 = vld [vmem:[%s535 + $0x3] sm:$0xff]
        %v885 = vld [vmem:[%s535 + $0xb] sm:$0xff]
        %v886 = vlaneseq
        %v887 = vshrl.u32 %v886, 7
        %v888 = vsub.s32 0, %v887
        %v889 = vrot.slane %v883, %v888
        %v890 = vmul.f32 %v889, %v884
        %v891 = vmul.f32 %v889, %v885
        %v892 = vadd.f32 %v848, %v890
        %v893 = vadd.f32 %v849, %v891
        %v894 = vld [vmem:[%s0 + $0x19] sm:$0x1]
        %v895 = vld [vmem:[%s560 + $0x3] sm:$0xff]
        %v896 = vld [vmem:[%s560 + $0xb] sm:$0xff]
        %v897 = vlaneseq
        %v898 = vshrl.u32 %v897, 7
        %v899 = vsub.s32 0, %v898
        %v900 = vrot.slane %v894, %v899
        %v901 = vmul.f32 %v900, %v895
        %v902 = vmul.f32 %v900, %v896
        %v903 = vadd.f32 %v859, %v901
        %v904 = vadd.f32 %v860, %v902
        %v905 = vld [vmem:[%s0 + $0x1a] sm:$0x1]
        %v906 = vld [vmem:[%s585 + $0x3] sm:$0xff]
        %v907 = vld [vmem:[%s585 + $0xb] sm:$0xff]
        %v908 = vlaneseq
        %v909 = vshrl.u32 %v908, 7
        %v910 = vsub.s32 0, %v909
        %v911 = vrot.slane %v905, %v910
        %v912 = vmul.f32 %v911, %v906
        %v913 = vmul.f32 %v911, %v907
        %v914 = vadd.f32 %v870, %v912
        %v915 = vadd.f32 %v871, %v913
        %v916 = vld [vmem:[%s0 + $0x1b] sm:$0x1]
        %v917 = vld [vmem:[%s610 + $0x3] sm:$0xff]
        %v918 = vld [vmem:[%s610 + $0xb] sm:$0xff]
        %v919 = vlaneseq
        %v920 = vshrl.u32 %v919, 7
        %v921 = vsub.s32 0, %v920
        %v922 = vrot.slane %v916, %v921
        %v923 = vmul.f32 %v922, %v917
        %v924 = vmul.f32 %v922, %v918
        %v925 = vadd.f32 %v881, %v923
        %v926 = vadd.f32 %v882, %v924
        %v927 = vld [vmem:[%s0 + $0x1c] sm:$0x1]
        %v928 = vld [vmem:[#allocation2 + $0x4] sm:$0xff]
        %v929 = vld [vmem:[#allocation2 + $0xc] sm:$0xff]
        %v930 = vlaneseq
        %v931 = vshrl.u32 %v930, 7
        %v932 = vsub.s32 0, %v931
        %v933 = vrot.slane %v927, %v932
        %v934 = vmul.f32 %v933, %v928
        %v935 = vmul.f32 %v933, %v929
        %v936 = vadd.f32 %v892, %v934
        %v937 = vadd.f32 %v893, %v935
        %v938 = vld [vmem:[%s0 + $0x1d] sm:$0x1]
        %v939 = vld [vmem:[%s485 + $0x4] sm:$0xff]
        %v940 = vld [vmem:[%s485 + $0xc] sm:$0xff]
        %v941 = vlaneseq
        %v942 = vshrl.u32 %v941, 7
        %v943 = vsub.s32 0, %v942
        %v944 = vrot.slane %v938, %v943
        %v945 = vmul.f32 %v944, %v939
        %v946 = vmul.f32 %v944, %v940
        %v947 = vadd.f32 %v903, %v945
        %v948 = vadd.f32 %v904, %v946
        %v949 = vld [vmem:[%s0 + $0x1e] sm:$0x1]
        %v950 = vld [vmem:[%s510 + $0x4] sm:$0xff]
        %v951 = vld [vmem:[%s510 + $0xc] sm:$0xff]
        %v952 = vlaneseq
        %v953 = vshrl.u32 %v952, 7
        %v954 = vsub.s32 0, %v953
        %v955 = vrot.slane %v949, %v954
        %v956 = vmul.f32 %v955, %v950
        %v957 = vmul.f32 %v955, %v951
        %v958 = vadd.f32 %v914, %v956
        %v959 = vadd.f32 %v915, %v957
        %v960 = vld [vmem:[%s0 + $0x1f] sm:$0x1]
        %v961 = vld [vmem:[%s535 + $0x4] sm:$0xff]
        %v962 = vld [vmem:[%s535 + $0xc] sm:$0xff]
        %v963 = vlaneseq
        %v964 = vshrl.u32 %v963, 7
        %v965 = vsub.s32 0, %v964
        %v966 = vrot.slane %v960, %v965
        %v967 = vmul.f32 %v966, %v961
        %v968 = vmul.f32 %v966, %v962
        %v969 = vadd.f32 %v925, %v967
        %v970 = vadd.f32 %v926, %v968
        %v971 = vld [vmem:[%s0 + $0x20] sm:$0x1]
        %v972 = vld [vmem:[%s560 + $0x4] sm:$0xff]
        %v973 = vld [vmem:[%s560 + $0xc] sm:$0xff]
        %v974 = vlaneseq
        %v975 = vshrl.u32 %v974, 7
        %v976 = vsub.s32 0, %v975
        %v977 = vrot.slane %v971, %v976
        %v978 = vmul.f32 %v977, %v972
        %v979 = vmul.f32 %v977, %v973
        %v980 = vadd.f32 %v936, %v978
        %v981 = vadd.f32 %v937, %v979
        %v982 = vld [vmem:[%s0 + $0x21] sm:$0x1]
        %v983 = vld [vmem:[%s585 + $0x4] sm:$0xff]
        %v984 = vld [vmem:[%s585 + $0xc] sm:$0xff]
        %v985 = vlaneseq
        %v986 = vshrl.u32 %v985, 7
        %v987 = vsub.s32 0, %v986
        %v988 = vrot.slane %v982, %v987
        %v989 = vmul.f32 %v988, %v983
        %v990 = vmul.f32 %v988, %v984
        %v991 = vadd.f32 %v947, %v989
        %v992 = vadd.f32 %v948, %v990
        %v993 = vld [vmem:[%s0 + $0x22] sm:$0x1]
        %v994 = vld [vmem:[%s610 + $0x4] sm:$0xff]
        %v995 = vld [vmem:[%s610 + $0xc] sm:$0xff]
        %v996 = vlaneseq
        %v997 = vshrl.u32 %v996, 7
        %v998 = vsub.s32 0, %v997
        %v999 = vrot.slane %v993, %v998
        %v1000 = vmul.f32 %v999, %v994
        %v1001 = vmul.f32 %v999, %v995
        %v1002 = vadd.f32 %v958, %v1000
        %v1003 = vadd.f32 %v959, %v1001
        %v1004 = vld [vmem:[%s0 + $0x23] sm:$0x1]
        %v1005 = vld [vmem:[#allocation2 + $0x5] sm:$0xff]
        %v1006 = vld [vmem:[#allocation2 + $0xd] sm:$0xff]
        %v1007 = vlaneseq
        %v1008 = vshrl.u32 %v1007, 7
        %v1009 = vsub.s32 0, %v1008
        %v1010 = vrot.slane %v1004, %v1009
        %v1011 = vmul.f32 %v1010, %v1005
        %v1012 = vmul.f32 %v1010, %v1006
        %v1013 = vadd.f32 %v969, %v1011
        %v1014 = vadd.f32 %v970, %v1012
        %v1015 = vld [vmem:[%s0 + $0x24] sm:$0x1]
        %v1016 = vld [vmem:[%s485 + $0x5] sm:$0xff]
        %v1017 = vld [vmem:[%s485 + $0xd] sm:$0xff]
        %v1018 = vlaneseq
        %v1019 = vshrl.u32 %v1018, 7
        %v1020 = vsub.s32 0, %v1019
        %v1021 = vrot.slane %v1015, %v1020
        %v1022 = vmul.f32 %v1021, %v1016
        %v1023 = vmul.f32 %v1021, %v1017
        %v1024 = vadd.f32 %v980, %v1022
        %v1025 = vadd.f32 %v981, %v1023
        %v1026 = vld [vmem:[%s0 + $0x25] sm:$0x1]
        %v1027 = vld [vmem:[%s510 + $0x5] sm:$0xff]
        %v1028 = vld [vmem:[%s510 + $0xd] sm:$0xff]
        %v1029 = vlaneseq
        %v1030 = vshrl.u32 %v1029, 7
        %v1031 = vsub.s32 0, %v1030
        %v1032 = vrot.slane %v1026, %v1031
        %v1033 = vmul.f32 %v1032, %v1027
        %v1034 = vmul.f32 %v1032, %v1028
        %v1035 = vadd.f32 %v991, %v1033
        %v1036 = vadd.f32 %v992, %v1034
        %v1037 = vld [vmem:[%s0 + $0x26] sm:$0x1]
        %v1038 = vld [vmem:[%s535 + $0x5] sm:$0xff]
        %v1039 = vld [vmem:[%s535 + $0xd] sm:$0xff]
        %v1040 = vlaneseq
        %v1041 = vshrl.u32 %v1040, 7
        %v1042 = vsub.s32 0, %v1041
        %v1043 = vrot.slane %v1037, %v1042
        %v1044 = vmul.f32 %v1043, %v1038
        %v1045 = vmul.f32 %v1043, %v1039
        %v1046 = vadd.f32 %v1002, %v1044
        %v1047 = vadd.f32 %v1003, %v1045
        %v1048 = vld [vmem:[%s0 + $0x27] sm:$0x1]
        %v1049 = vld [vmem:[%s560 + $0x5] sm:$0xff]
        %v1050 = vld [vmem:[%s560 + $0xd] sm:$0xff]
        %v1051 = vlaneseq
        %v1052 = vshrl.u32 %v1051, 7
        %v1053 = vsub.s32 0, %v1052
        %v1054 = vrot.slane %v1048, %v1053
        %v1055 = vmul.f32 %v1054, %v1049
        %v1056 = vmul.f32 %v1054, %v1050
        %v1057 = vadd.f32 %v1013, %v1055
        %v1058 = vadd.f32 %v1014, %v1056
        %v1059 = vld [vmem:[%s0 + $0x28] sm:$0x1]
        %v1060 = vld [vmem:[%s585 + $0x5] sm:$0xff]
        %v1061 = vld [vmem:[%s585 + $0xd] sm:$0xff]
        %v1062 = vlaneseq
        %v1063 = vshrl.u32 %v1062, 7
        %v1064 = vsub.s32 0, %v1063
        %v1065 = vrot.slane %v1059, %v1064
        %v1066 = vmul.f32 %v1065, %v1060
        %v1067 = vmul.f32 %v1065, %v1061
        %v1068 = vadd.f32 %v1024, %v1066
        %v1069 = vadd.f32 %v1025, %v1067
        %v1070 = vld [vmem:[%s0 + $0x29] sm:$0x1]
        %v1071 = vld [vmem:[%s610 + $0x5] sm:$0xff]
        %v1072 = vld [vmem:[%s610 + $0xd] sm:$0xff]
        %v1073 = vlaneseq
        %v1074 = vshrl.u32 %v1073, 7
        %v1075 = vsub.s32 0, %v1074
        %v1076 = vrot.slane %v1070, %v1075
        %v1077 = vmul.f32 %v1076, %v1071
        %v1078 = vmul.f32 %v1076, %v1072
        %v1079 = vadd.f32 %v1035, %v1077
        %v1080 = vadd.f32 %v1036, %v1078
        %v1081 = vld [vmem:[%s0 + $0x2a] sm:$0x1]
        %v1082 = vld [vmem:[#allocation2 + $0x6] sm:$0xff]
        %v1083 = vld [vmem:[#allocation2 + $0xe] sm:$0xff]
        %v1084 = vlaneseq
        %v1085 = vshrl.u32 %v1084, 7
        %v1086 = vsub.s32 0, %v1085
        %v1087 = vrot.slane %v1081, %v1086
        %v1088 = vmul.f32 %v1087, %v1082
        %v1089 = vmul.f32 %v1087, %v1083
        %v1090 = vadd.f32 %v1046, %v1088
        %v1091 = vadd.f32 %v1047, %v1089
        %v1092 = vld [vmem:[%s0 + $0x2b] sm:$0x1]
        %v1093 = vld [vmem:[%s485 + $0x6] sm:$0xff]
        %v1094 = vld [vmem:[%s485 + $0xe] sm:$0xff]
        %v1095 = vlaneseq
        %v1096 = vshrl.u32 %v1095, 7
        %v1097 = vsub.s32 0, %v1096
        %v1098 = vrot.slane %v1092, %v1097
        %v1099 = vmul.f32 %v1098, %v1093
        %v1100 = vmul.f32 %v1098, %v1094
        %v1101 = vadd.f32 %v1057, %v1099
        %v1102 = vadd.f32 %v1058, %v1100
        %v1103 = vld [vmem:[%s0 + $0x2c] sm:$0x1]
        %v1104 = vld [vmem:[%s510 + $0x6] sm:$0xff]
        %v1105 = vld [vmem:[%s510 + $0xe] sm:$0xff]
        %v1106 = vlaneseq
        %v1107 = vshrl.u32 %v1106, 7
        %v1108 = vsub.s32 0, %v1107
        %v1109 = vrot.slane %v1103, %v1108
        %v1110 = vmul.f32 %v1109, %v1104
        %v1111 = vmul.f32 %v1109, %v1105
        %v1112 = vadd.f32 %v1068, %v1110
        %v1113 = vadd.f32 %v1069, %v1111
        %v1114 = vld [vmem:[%s0 + $0x2d] sm:$0x1]
        %v1115 = vld [vmem:[%s535 + $0x6] sm:$0xff]
        %v1116 = vld [vmem:[%s535 + $0xe] sm:$0xff]
        %v1117 = vlaneseq
        %v1118 = vshrl.u32 %v1117, 7
        %v1119 = vsub.s32 0, %v1118
        %v1120 = vrot.slane %v1114, %v1119
        %v1121 = vmul.f32 %v1120, %v1115
        %v1122 = vmul.f32 %v1120, %v1116
        %v1123 = vadd.f32 %v1079, %v1121
        %v1124 = vadd.f32 %v1080, %v1122
        %v1125 = vld [vmem:[%s0 + $0x2e] sm:$0x1]
        %v1126 = vld [vmem:[%s560 + $0x6] sm:$0xff]
        %v1127 = vld [vmem:[%s560 + $0xe] sm:$0xff]
        %v1128 = vlaneseq
        %v1129 = vshrl.u32 %v1128, 7
        %v1130 = vsub.s32 0, %v1129
        %v1131 = vrot.slane %v1125, %v1130
        %v1132 = vmul.f32 %v1131, %v1126
        %v1133 = vmul.f32 %v1131, %v1127
        %v1134 = vadd.f32 %v1090, %v1132
        %v1135 = vadd.f32 %v1091, %v1133
        %v1136 = vld [vmem:[%s0 + $0x2f] sm:$0x1]
        %v1137 = vld [vmem:[%s585 + $0x6] sm:$0xff]
        %v1138 = vld [vmem:[%s585 + $0xe] sm:$0xff]
        %v1139 = vlaneseq
        %v1140 = vshrl.u32 %v1139, 7
        %v1141 = vsub.s32 0, %v1140
        %v1142 = vrot.slane %v1136, %v1141
        %v1143 = vmul.f32 %v1142, %v1137
        %v1144 = vmul.f32 %v1142, %v1138
        %v1145 = vadd.f32 %v1101, %v1143
        %v1146 = vadd.f32 %v1102, %v1144
        %v1147 = vld [vmem:[%s0 + $0x30] sm:$0x1]
        %v1148 = vld [vmem:[%s610 + $0x6] sm:$0xff]
        %v1149 = vld [vmem:[%s610 + $0xe] sm:$0xff]
        %v1150 = vlaneseq
        %v1151 = vshrl.u32 %v1150, 7
        %v1152 = vsub.s32 0, %v1151
        %v1153 = vrot.slane %v1147, %v1152
        %v1154 = vmul.f32 %v1153, %v1148
        %v1155 = vmul.f32 %v1153, %v1149
        %v1156 = vadd.f32 %v1112, %v1154
        %v1157 = vadd.f32 %v1113, %v1155
        %v1158 = vadd.f32 %v1156, %v1123
        %v1159 = vadd.f32 %v1157, %v1124
        %v1160 = vadd.f32 %v1134, %v1145
        %v1161 = vadd.f32 %v1135, %v1146
        %v1162 = vadd.f32 %v1158, %v1160
        %v1163 = vadd.f32 %v1159, %v1161
        %1166 = vrot.lane.b32.xlu0 %v1162, 112
        %v1167 = vpop.permute.xlu0 %1166
        %1168 = vrot.lane.b32.xlu0 %v1163, 112
        %v1169 = vpop.permute.xlu0 %1168
        %v1172 = vadd.f32 %v1162, %v1167
        %v1173 = vadd.f32 %v1163, %v1169
        %1174 = vst.msk [vmem:[%s161] sm:$0xff] %vm452, %v1172
        %1175 = vst.msk [vmem:[%s161 + $0x8] sm:$0xff] %vm452, %v1173
        %s1176 = sand.u32 %s74, 1
        %s1177 = scalar_lea.sflag [#allocation5], %s1176
        %s1178 = sand.u32 %s74, 1
        %s1179 = smul.addr %s1178, 16
        %s1180 = scalar_lea.vmem [#allocation6], %s1179
        // Predicated region
        $region33: #{tpu_custom_call.1} parent=27 // pred_check
          %p1181 = pneg %p84
        $region34: #{tpu_custom_call.1} parent=27 // pred_check_branch
          %1183 = sbr.rel (%p1181) target = $region36
        $region35: #{tpu_custom_call.1} parent=27 // pred_region
          %s1185 = ssub.s32 256, 256
          %1186 = vsyncadd %s1177, %s1185
          %s1187 = smul.addr %s19, 2
          %s1188 = smul.addr %s1187, 128
          %s1189 = scalar_lea.hbm %s2, %s1188
          %s1190 = sshll.u32 %s1180, 4
          %s1191 = int_to_ptr.vmem [resolvable:$true] %s1190
          %1196 = dma.vmem_to_hbm [thread:$0]  %s1191, 256, %s1189, %s1177, 128, 128, 8
        $region36: #{tpu_custom_call.1} parent=27 // pred_fallthru
          _
      $region28: #{tpu_custom_call.1} parent=5 // pred_fallthru
        _
      %p1197 = scmp.le.s32.totalorder 2, %s14
      // Predicated region
      $region37: #{tpu_custom_call.1} parent=5 // pred_check
        %p1198 = pneg %p1197
      $region38: #{tpu_custom_call.1} parent=5 // pred_check_branch
        %1200 = sbr.rel (%p1198) target = $region40
      $region39: #{tpu_custom_call.1} parent=5 // pred_region
        %s1201 = ssub.s32 %s14, 2
        // Predicated region
        $region41: #{tpu_custom_call.1} parent=39 // pred_check
          %p1202 = pneg %p90
        $region42: #{tpu_custom_call.1} parent=39 // pred_check_branch
          %1204 = sbr.rel (%p1202) target = $region44
        $region43: #{tpu_custom_call.1} parent=39 // pred_region
          %s1205 = sand.u32 %s75, 1
          %s1206 = scalar_lea.sflag [#allocation5], %s1205
          %s1207 = sand.u32 %s75, 1
          %s1208 = smul.addr %s1207, 16
          %s1209 = scalar_lea.vmem [#allocation6], %s1208
          %1210 = dma.done %s1206, 256
        $region44: #{tpu_custom_call.1} parent=39 // pred_fallthru
          _
      $region40: #{tpu_custom_call.1} parent=5 // pred_fallthru
        _
    $region6: #{tpu_custom_call.1} parent=1 // loop_footer
      %s18 = sadd.s32 1, %s14
    $region7: #{tpu_custom_call.1} parent=1 // loop_footer_branch
      %13 = sbr.rel target = $region3
    $region8: #{tpu_custom_call.1} parent=1 // loop_exit
      _
    %1211 = vsyncpa [#allocation4], 1
    %s1212 = scalar_lea.sflag [#allocation4], 1
    %1213 = vsyncpa %s1212, 1
    %1214 = vsyncpa [#allocation5], 1
    %s1215 = scalar_lea.sflag [#allocation5], 1
    %1216 = vsyncpa %s1215, 1

</llo_original>
